<compile_context>
chip_gen: v6e
topology: v6e:2x2x1
jax: 0.10.0
libtpu: 0.0.40
codegen_flags: <defaults>
</compile_context>

<pallas_src>
import functools

import jax
import jax.numpy as jnp
from jax.experimental import pallas as pl
from jax.experimental.pallas import tpu as pltpu

_LANE = 128
_IGNORE_INDEX = -100


def _round_up(x, m):
    return (x + m - 1) // m * m


def _token_cls_kernel(x_ref, w_ref, b0_ref, wct_ref, bc_ref, labels_ref,
                      logits_ref, partial_ref, h_acc_ref, *, num_classes):
    # x_ref:      (TM, TK) f32   token tile (bf16 cast happens here, in-kernel)
    # w_ref:      (TK, H)  bf16  merged (W0 + scaling*B@A)^T block
    # b0_ref:     (1, H)   f32
    # wct_ref:    (H, C_pad) bf16 (classifier, zero-padded columns)
    # bc_ref:     (1, C_pad) f32 (-1e9 in padded lanes)
    # labels_ref: (TM, 1)  i32
    # logits_ref: (TM, C_pad) bf16 (lane-dense output)
    # partial_ref:(1, 8, 128) f32 -> [0,0,0]=nll_sum, [0,0,1]=valid_count
    # h_acc_ref:  (TM, H)  f32 accumulator scratch for the K reduction
    k = pl.program_id(1)

    # Main projection block: bf16 in / f32 MXU accumulate.
    x = x_ref[...].astype(w_ref.dtype)
    part = jnp.dot(x, w_ref[...], preferred_element_type=jnp.float32)       # (TM, H)

    @pl.when(k == 0)
    def _():
        h_acc_ref[...] = part

    @pl.when(k > 0)
    def _():
        h_acc_ref[...] = h_acc_ref[...] + part

    @pl.when(k == pl.num_programs(1) - 1)
    def _():
        # Finalize: bias + tanh (f32 EUP), classifier head, CE partials.
        h = jnp.tanh(h_acc_ref[...] + b0_ref[...])                          # (TM, H) f32
        logits = jnp.dot(h.astype(wct_ref.dtype), wct_ref[...],
                         preferred_element_type=jnp.float32) + bc_ref[...]  # (TM, C_pad)
        logits_ref[...] = logits.astype(logits_ref.dtype)                   # bf16 store

        # Token-level cross-entropy (mean over labels != -100 done in wrapper).
        # Padded lanes hold -1e9 logits -> exp underflows to exactly 0 in f32.
        m = jnp.max(logits, axis=-1, keepdims=True)
        lse = jnp.log(jnp.sum(jnp.exp(logits - m), axis=-1, keepdims=True)) + m

        labels = labels_ref[...]                                            # (TM, 1)
        col = jax.lax.broadcasted_iota(jnp.int32, logits.shape, 1)
        picked = jnp.sum(jnp.where(col == labels, logits, 0.0),
                         axis=-1, keepdims=True)                            # (TM, 1)

        valid = (labels >= 0) & (labels < num_classes)
        nll_sum = jnp.sum(jnp.where(valid, lse - picked, 0.0))
        cnt = jnp.sum(valid.astype(jnp.float32))

        sub = jax.lax.broadcasted_iota(jnp.int32, (8, _LANE), 0)
        lane = jax.lax.broadcasted_iota(jnp.int32, (8, _LANE), 1)
        tile = jnp.where((sub == 0) & (lane == 0), nll_sum,
                         jnp.where((sub == 0) & (lane == 1), cnt, 0.0))
        partial_ref[...] = tile.reshape((1, 8, _LANE))


def peft_token_cls_forward(inputs_embeds, labels, params, *, scaling, tm=512, tk_h=None):
    """inputs_embeds: [B, S, H] f32, labels: [B, S] i32 -> (logits [B, S, C] f32, loss [])."""
    B, S, H = inputs_embeds.shape
    C = params["wc"].shape[0]
    M = B * S
    c_pad = _round_up(C, _LANE)

    # Row tile: multiple of 16 (bf16 logits sublane packing), clamped to padded M.
    tm = max(16, min(_round_up(tm, 16), _round_up(M, 16)))
    num_tiles = pl.cdiv(M, tm)
    m_pad = num_tiles * tm

    # K tile over H_in: keep W_eff^T resident for moderate H, K-tile for large H
    # so the kernel fits v7x's 64 MiB VMEM.
    if tk_h is None:
        if 2 * H * H <= 8 * 2**20:
            tk_h = H
        else:
            tk_h = next((t for t in (1024, 512, 256, 128) if H % t == 0), H)
    assert H % tk_h == 0, "H must be divisible by the chosen K tile"
    num_k = H // tk_h

    # ---- Weight prep (one-time, wrapper side) -------------------------------
    # Merge the LoRA adapter into the frozen base weight in f32, cast to bf16 once:
    #   x @ W0^T + scaling*(x@A^T)@B^T == x @ (W0 + scaling * B@A)^T
    w_eff = params["w0"].astype(jnp.float32) + scaling * jnp.matmul(
        params["b"].astype(jnp.float32), params["a"].astype(jnp.float32))
    w_eff_t = w_eff.T.astype(jnp.bfloat16)                                   # (H, H)

    wct = jnp.zeros((H, c_pad), jnp.bfloat16).at[:, :C].set(
        params["wc"].T.astype(jnp.bfloat16))                                 # (H, C_pad)
    b0 = params["b0"].reshape(1, H).astype(jnp.float32)
    bc = jnp.full((1, c_pad), -1e9, jnp.float32).at[:, :C].set(
        params["bc"].reshape(1, C).astype(jnp.float32))

    # Token slab stays f32 (bf16 cast happens in-kernel); only the M remainder is
    # padded (no-op for production shapes where M % tm == 0).
    x = inputs_embeds.reshape(M, H).astype(jnp.float32)
    lab = labels.reshape(M, 1).astype(jnp.int32)
    if m_pad > M:
        x = jnp.pad(x, ((0, m_pad - M), (0, 0)))
        lab = jnp.pad(lab, ((0, m_pad - M), (0, 0)), constant_values=_IGNORE_INDEX)

    # ---- Generation-aware VMEM limit ----------------------------------------
    try:
        cap = int(pltpu.get_tpu_info().vmem_capacity_bytes)
    except Exception:
        cap = 64 * 2**20  # conservative (v7x per-TC capacity)
    weight_bytes = tk_h * H * 2 + H * c_pad * 2 + (H + c_pad) * 4
    tile_bytes = tm * tk_h * 4 + tm * 4 + tm * c_pad * 2 + 8 * _LANE * 4
    need = 2 * (weight_bytes + tile_bytes) + tm * H * 4 + (4 << 20)  # conservative
    vmem_limit = int(min(int(cap * 0.8), max(need, 32 * 2**20)))

    kernel = functools.partial(_token_cls_kernel, num_classes=C)

    def _call(single_buffer_weights):
        def const_spec(shape):
            # Constant-index weights/biases: fetched once; request a single buffer.
            if single_buffer_weights:
                return pl.BlockSpec(shape, lambda i, k: (0,) * len(shape),
                                    pipeline_mode=pl.Buffered(1))
            return pl.BlockSpec(shape, lambda i, k: (0,) * len(shape))

        if num_k == 1:
            w_spec = const_spec((tk_h, H))                   # fully resident W_eff^T
        else:
            w_spec = pl.BlockSpec((tk_h, H), lambda i, k: (k, 0))  # pipelined K blocks

        return pl.pallas_call(
            kernel,
            out_shape=(
                jax.ShapeDtypeStruct((m_pad, c_pad), jnp.bfloat16),
                jax.ShapeDtypeStruct((num_tiles, 8, _LANE), jnp.float32),
            ),
            grid=(num_tiles, num_k),
            in_specs=[
                pl.BlockSpec((tm, tk_h), lambda i, k: (i, k)),   # x tile (pipelined)
                w_spec,                                          # merged W_eff^T
                const_spec((1, H)),                              # b0
                const_spec((H, c_pad)),                          # Wc^T padded
                const_spec((1, c_pad)),                          # bc padded
                pl.BlockSpec((tm, 1), lambda i, k: (i, 0)),      # labels tile
            ],
            out_specs=(
                pl.BlockSpec((tm, c_pad), lambda i, k: (i, 0)),      # bf16 logits
                pl.BlockSpec((1, 8, _LANE), lambda i, k: (i, 0, 0)), # CE partials
            ),
            scratch_shapes=[pltpu.VMEM((tm, H), jnp.float32)],       # K-reduction acc
            compiler_params=pltpu.CompilerParams(
                dimension_semantics=("parallel", "arbitrary"),
                vmem_limit_bytes=vmem_limit,
            ),
        )(x, w_eff_t, b0, wct, bc, lab)

    try:
        logits_pad, partials = _call(True)
    except Exception:
        # Fallback if this jax build rejects pl.Buffered(1): default double-buffering.
        logits_pad, partials = _call(False)

    logits = logits_pad[:M, :C].astype(jnp.float32).reshape(B, S, C)
    nll_total = jnp.sum(partials[:, 0, 0])
    cnt_total = jnp.sum(partials[:, 0, 1])
    loss = nll_total / jnp.maximum(cnt_total, 1.0)
    return logits, loss


def _reference(inputs_embeds, labels, params, *, scaling):
    """Pure-JAX reference mirroring the merged-LoRA / bf16-in, f32-accumulate scheme."""
    B, S, H = inputs_embeds.shape
    C = params["wc"].shape[0]
    # Merging LoRA into W0 is mathematically identical to the two-stage LoRA forward.
    w_eff = params["w0"].astype(jnp.float32) + scaling * jnp.matmul(
        params["b"].astype(jnp.float32), params["a"].astype(jnp.float32))
    xb = inputs_embeds.reshape(B * S, H).astype(jnp.bfloat16)
    h = jnp.dot(xb, w_eff.T.astype(jnp.bfloat16), preferred_element_type=jnp.float32)
    h = jnp.tanh(h + params["b0"].reshape(1, H).astype(jnp.float32))
    logits = (jnp.dot(h.astype(jnp.bfloat16), params["wc"].T.astype(jnp.bfloat16),
                      preferred_element_type=jnp.float32)
              + params["bc"].reshape(1, C).astype(jnp.float32))

    logp = jax.nn.log_softmax(logits, axis=-1)
    lab = labels.reshape(-1)
    valid = (lab >= 0) & (lab < C)
    safe_lab = jnp.where(valid, lab, 0)
    nll = -jnp.take_along_axis(logp, safe_lab[:, None], axis=-1)[:, 0]
    nll = jnp.where(valid, nll, 0.0)
    loss = jnp.sum(nll) / jnp.maximum(jnp.sum(valid.astype(jnp.float32)), 1.0)
    return logits.reshape(B, S, C), loss


if __name__ == "__main__":
    # Small shapes consistent with the forward: batch=2, seq=12, hidden=32,
    # LoRA rank r=4, num_labels=8.  M=24 tokens.
    B, S, H, R, C = 2, 12, 32, 4, 8
    lora_alpha = 8
    scaling = lora_alpha / R

    key = jax.random.PRNGKey(0)
    k = jax.random.split(key, 8)
    inputs_embeds = jax.random.normal(k[0], (B, S, H), dtype=jnp.float32)
    labels = jax.random.randint(k[1], (B, S), 0, C, dtype=jnp.int32)
    # Exercise ignore_index=-100 (HF padding convention).
    labels = labels.at[0, 0].set(-100)
    labels = labels.at[1, 3].set(-100)

    params = {
        "w0": jax.random.normal(k[2], (H, H), dtype=jnp.float32) * 0.1,   # frozen base dense
        "b0": jax.random.normal(k[3], (1, H), dtype=jnp.float32) * 0.05,
        "a":  jax.random.normal(k[4], (R, H), dtype=jnp.float32) * 0.1,   # LoRA A
        "b":  jax.random.normal(k[5], (H, R), dtype=jnp.float32) * 0.1,   # LoRA B (non-zero for test)
        "wc": jax.random.normal(k[6], (C, H), dtype=jnp.float32) * 0.1,   # classifier weight
        "bc": jax.random.normal(k[7], (1, C), dtype=jnp.float32) * 0.05,  # classifier bias
    }

    # tm=16 -> 2 row tiles at M=24 (last tile padded to 32), exercising the
    # pipelined grid, the per-tile CE partials and the remainder-padding path.
    logits, loss = peft_token_cls_forward(inputs_embeds, labels, params,
                                          scaling=scaling, tm=16)
    jax.block_until_ready((logits, loss))

    ref_logits, ref_loss = _reference(inputs_embeds, labels, params, scaling=scaling)
    assert jnp.allclose(logits, ref_logits, atol=1e-2, rtol=1e-2), (
        float(jnp.max(jnp.abs(logits - ref_logits))))
    assert jnp.allclose(loss, ref_loss, atol=1e-2, rtol=1e-2), (float(loss), float(ref_loss))

    print("KERNEL_OK")
</pallas_src>

<mosaic_0001>
module attributes {stable_mosaic.version = 11 : i64} {
  func.func @_token_cls_kernel(%arg0: i32, %arg1: i32, %arg2: memref<16x32xf32, #tpu.memory_space<vmem>>, %arg3: memref<32x32xbf16, #tpu.memory_space<vmem>>, %arg4: memref<1x32xf32, #tpu.memory_space<vmem>>, %arg5: memref<32x128xbf16, #tpu.memory_space<vmem>>, %arg6: memref<1x128xf32, #tpu.memory_space<vmem>>, %arg7: memref<16x1xi32, #tpu.memory_space<vmem>>, %arg8: memref<16x128xbf16, #tpu.memory_space<vmem>>, %arg9: memref<1x8x128xf32, #tpu.memory_space<vmem>>, %arg10: memref<16x32xf32, #tpu.memory_space<vmem>>) attributes {dimension_semantics = [#tpu.dimension_semantics<parallel>, #tpu.dimension_semantics<arbitrary>], iteration_bounds = array<i64: 2, 1>, scalar_prefetch = 0 : i64, scratch_operands = 1 : i64, tpu.core_type = #tpu.core_type<tc>, window_params = [{transform_indices = @transform_0, window_bounds = array<i64: 16, 32>}, {pipeline_mode = #tpu.pipeline_mode<synchronous>, transform_indices = @transform_1, window_bounds = array<i64: 32, 32>}, {pipeline_mode = #tpu.pipeline_mode<synchronous>, transform_indices = @transform_2, window_bounds = array<i64: 1, 32>}, {pipeline_mode = #tpu.pipeline_mode<synchronous>, transform_indices = @transform_3, window_bounds = array<i64: 32, 128>}, {pipeline_mode = #tpu.pipeline_mode<synchronous>, transform_indices = @transform_4, window_bounds = array<i64: 1, 128>}, {transform_indices = @transform_5, window_bounds = array<i64: 16, 1>}, {transform_indices = @transform_6, window_bounds = array<i64: 16, 128>}, {transform_indices = @transform_7, window_bounds = array<i64: 1, 8, 128>}]} {
    %c0 = arith.constant 0 : index
    %c0_0 = arith.constant 0 : index
    %0 = vector.load %arg2[%c0, %c0_0] : memref<16x32xf32, #tpu.memory_space<vmem>>, vector<16x32xf32>
    %1 = arith.truncf %0 : vector<16x32xf32> to vector<16x32xbf16>
    %c0_1 = arith.constant 0 : index
    %c0_2 = arith.constant 0 : index
    %2 = vector.load %arg3[%c0_1, %c0_2] : memref<32x32xbf16, #tpu.memory_space<vmem>>, vector<32x32xbf16>
    %cst = arith.constant dense<0.000000e+00> : vector<16x32xf32>
    %3 = tpu.matmul %1, %2, %cst {dimension_numbers = #tpu.dot_dimension_numbers<[1], [0], [0], [1], [0, 0, 1, 1], [], []>} : vector<16x32xbf16>, vector<32x32xbf16>, vector<16x32xf32> -> vector<16x32xf32>
    %c0_i32 = arith.constant 0 : i32
    %4 = arith.cmpi eq, %arg1, %c0_i32 : i32
    %5 = arith.extui %4 : i1 to i32
    %c0_i32_3 = arith.constant 0 : i32
    %6 = arith.cmpi ne, %5, %c0_i32_3 : i32
    scf.if %6 {
      %c0_8 = arith.constant 0 : index
      %c0_9 = arith.constant 0 : index
      %13 = vector.load %arg10[%c0_8, %c0_9] : memref<16x32xf32, #tpu.memory_space<vmem>>, vector<16x32xf32>
      tpu.vector_store %arg10[%c0_8, %c0_9], %3 {strides = array<i32>} : memref<16x32xf32, #tpu.memory_space<vmem>>, vector<16x32xf32>,
    } else {
    }
    %c0_i32_4 = arith.constant 0 : i32
    %7 = arith.cmpi sgt, %arg1, %c0_i32_4 : i32
    %8 = arith.extui %7 : i1 to i32
    %c0_i32_5 = arith.constant 0 : i32
    %9 = arith.cmpi ne, %8, %c0_i32_5 : i32
    scf.if %9 {
      %c0_8 = arith.constant 0 : index
      %c0_9 = arith.constant 0 : index
      %13 = vector.load %arg10[%c0_8, %c0_9] : memref<16x32xf32, #tpu.memory_space<vmem>>, vector<16x32xf32>
      %14 = arith.addf %13, %3 : vector<16x32xf32>
      %c0_10 = arith.constant 0 : index
      %c0_11 = arith.constant 0 : index
      %15 = vector.load %arg10[%c0_10, %c0_11] : memref<16x32xf32, #tpu.memory_space<vmem>>, vector<16x32xf32>
      tpu.vector_store %arg10[%c0_10, %c0_11], %14 {strides = array<i32>} : memref<16x32xf32, #tpu.memory_space<vmem>>, vector<16x32xf32>,
    } else {
    }
    %c0_i32_6 = arith.constant 0 : i32
    %10 = arith.cmpi eq, %arg1, %c0_i32_6 : i32
    %11 = arith.extui %10 : i1 to i32
    %c0_i32_7 = arith.constant 0 : i32
    %12 = arith.cmpi ne, %11, %c0_i32_7 : i32
    scf.if %12 {
      %c0_8 = arith.constant 0 : index
      %c0_9 = arith.constant 0 : index
      %13 = vector.load %arg10[%c0_8, %c0_9] : memref<16x32xf32, #tpu.memory_space<vmem>>, vector<16x32xf32>
      %c0_10 = arith.constant 0 : index
      %c0_11 = arith.constant 0 : index
      %14 = vector.load %arg4[%c0_10, %c0_11] : memref<1x32xf32, #tpu.memory_space<vmem>>, vector<1x32xf32>
      %15 = vector.broadcast %14 : vector<1x32xf32> to vector<16x32xf32>
      %16 = arith.addf %13, %15 : vector<16x32xf32>
      %17 = math.tanh %16 : vector<16x32xf32>
      %18 = arith.truncf %17 : vector<16x32xf32> to vector<16x32xbf16>
      %c0_12 = arith.constant 0 : index
      %c0_13 = arith.constant 0 : index
      %19 = vector.load %arg5[%c0_12, %c0_13] : memref<32x128xbf16, #tpu.memory_space<vmem>>, vector<32x128xbf16>
      %cst_14 = arith.constant dense<0.000000e+00> : vector<16x128xf32>
      %20 = tpu.matmul %18, %19, %cst_14 {dimension_numbers = #tpu.dot_dimension_numbers<[1], [0], [0], [1], [0, 0, 1, 1], [], []>} : vector<16x32xbf16>, vector<32x128xbf16>, vector<16x128xf32> -> vector<16x128xf32>
      %c0_15 = arith.constant 0 : index
      %c0_16 = arith.constant 0 : index
      %21 = vector.load %arg6[%c0_15, %c0_16] : memref<1x128xf32, #tpu.memory_space<vmem>>, vector<1x128xf32>
      %22 = vector.broadcast %21 : vector<1x128xf32> to vector<16x128xf32>
      %23 = arith.addf %20, %22 : vector<16x128xf32>
      %24 = arith.truncf %23 : vector<16x128xf32> to vector<16x128xbf16>
      %c0_17 = arith.constant 0 : index
      %c0_18 = arith.constant 0 : index
      %25 = vector.load %arg8[%c0_17, %c0_18] : memref<16x128xbf16, #tpu.memory_space<vmem>>, vector<16x128xbf16>
      tpu.vector_store %arg8[%c0_17, %c0_18], %24 {strides = array<i32>} : memref<16x128xbf16, #tpu.memory_space<vmem>>, vector<16x128xbf16>,
      %cst_19 = arith.constant dense<0xFF800000> : vector<16xf32>
      %26 = vector.multi_reduction <maximumf>, %23, %cst_19 [1] : vector<16x128xf32> to vector<16xf32>
      %27 = vector.shape_cast %26 : vector<16xf32> to vector<16x1xf32>
      %28 = vector.broadcast %27 : vector<16x1xf32> to vector<16x128xf32>
      %29 = arith.subf %23, %28 : vector<16x128xf32>
      %30 = math.exp %29 : vector<16x128xf32>
      %cst_20 = arith.constant dense<0.000000e+00> : vector<16xf32>
      %31 = vector.multi_reduction <add>, %30, %cst_20 [1] : vector<16x128xf32> to vector<16xf32>
      %32 = vector.shape_cast %31 : vector<16xf32> to vector<16x1xf32>
      %33 = math.log %32 : vector<16x1xf32>
      %34 = arith.addf %33, %27 : vector<16x1xf32>
      %c0_21 = arith.constant 0 : index
      %c0_22 = arith.constant 0 : index
      %35 = vector.load %arg7[%c0_21, %c0_22] : memref<16x1xi32, #tpu.memory_space<vmem>>, vector<16x1xi32>
      %36 = tpu.iota {dimensions = array<i32: 1>} : vector<16x128xi32>
      %37 = vector.broadcast %35 : vector<16x1xi32> to vector<16x128xi32>
      %38 = arith.cmpi eq, %36, %37 : vector<16x128xi32>
      %cst_23 = arith.constant 0.000000e+00 : f32
      %39 = vector.broadcast %cst_23 : f32 to vector<16x128xf32>
      %40 = arith.select %38, %23, %39 : vector<16x128xi1>, vector<16x128xf32>
      %cst_24 = arith.constant dense<0.000000e+00> : vector<16xf32>
      %41 = vector.multi_reduction <add>, %40, %cst_24 [1] : vector<16x128xf32> to vector<16xf32>
      %42 = vector.shape_cast %41 : vector<16xf32> to vector<16x1xf32>
      %c0_i32_25 = arith.constant 0 : i32
      %43 = vector.broadcast %c0_i32_25 : i32 to vector<16x1xi32>
      %44 = arith.cmpi sge, %35, %43 : vector<16x1xi32>
      %c8_i32 = arith.constant 8 : i32
      %45 = vector.broadcast %c8_i32 : i32 to vector<16x1xi32>
      %46 = arith.cmpi slt, %35, %45 : vector<16x1xi32>
      %47 = arith.andi %44, %46 : vector<16x1xi1>
      %48 = arith.subf %34, %42 : vector<16x1xf32>
      %cst_26 = arith.constant 0.000000e+00 : f32
      %49 = vector.broadcast %cst_26 : f32 to vector<16x1xf32>
      %50 = arith.select %47, %48, %49 : vector<16x1xi1>, vector<16x1xf32>
      %51 = vector.shape_cast %50 : vector<16x1xf32> to vector<1x16x1xf32>
      %cst_27 = arith.constant dense<0.000000e+00> : vector<1xf32>
      %52 = vector.multi_reduction <add>, %51, %cst_27 [1, 2] : vector<1x16x1xf32> to vector<1xf32>
      %53 = vector.shape_cast %52 : vector<1xf32> to vector<1x1x1xf32>
      %54 = vector.extract %53[0, 0, 0] : f32 from vector<1x1x1xf32>
      %55 = arith.extui %47 : vector<16x1xi1> to vector<16x1xi32>
      %56 = arith.sitofp %55 : vector<16x1xi32> to vector<16x1xf32>
      %57 = vector.shape_cast %56 : vector<16x1xf32> to vector<1x16x1xf32>
      %cst_28 = arith.constant dense<0.000000e+00> : vector<1xf32>
      %58 = vector.multi_reduction <add>, %57, %cst_28 [1, 2] : vector<1x16x1xf32> to vector<1xf32>
      %59 = vector.shape_cast %58 : vector<1xf32> to vector<1x1x1xf32>
      %60 = vector.extract %59[0, 0, 0] : f32 from vector<1x1x1xf32>
      %61 = tpu.iota {dimensions = array<i32: 0>} : vector<8x128xi32>
      %62 = tpu.iota {dimensions = array<i32: 1>} : vector<8x128xi32>
      %c0_i32_29 = arith.constant 0 : i32
      %63 = vector.broadcast %c0_i32_29 : i32 to vector<8x128xi32>
      %64 = arith.cmpi eq, %61, %63 : vector<8x128xi32>
      %c0_i32_30 = arith.constant 0 : i32
      %65 = vector.broadcast %c0_i32_30 : i32 to vector<8x128xi32>
      %66 = arith.cmpi eq, %62, %65 : vector<8x128xi32>
      %67 = arith.andi %64, %66 : vector<8x128xi1>
      %c0_i32_31 = arith.constant 0 : i32
      %68 = vector.broadcast %c0_i32_31 : i32 to vector<8x128xi32>
      %69 = arith.cmpi eq, %61, %68 : vector<8x128xi32>
      %c1_i32 = arith.constant 1 : i32
      %70 = vector.broadcast %c1_i32 : i32 to vector<8x128xi32>
      %71 = arith.cmpi eq, %62, %70 : vector<8x128xi32>
      %72 = arith.andi %69, %71 : vector<8x128xi1>
      %cst_32 = arith.constant 0.000000e+00 : f32
      %73 = vector.broadcast %60 : f32 to vector<8x128xf32>
      %74 = vector.broadcast %cst_32 : f32 to vector<8x128xf32>
      %75 = arith.select %72, %73, %74 : vector<8x128xi1>, vector<8x128xf32>
      %76 = vector.broadcast %54 : f32 to vector<8x128xf32>
      %77 = arith.select %67, %76, %75 : vector<8x128xi1>, vector<8x128xf32>
      %78 = vector.shape_cast %77 : vector<8x128xf32> to vector<1x8x128xf32>
      %c0_33 = arith.constant 0 : index
      %c0_34 = arith.constant 0 : index
      %c0_35 = arith.constant 0 : index
      %79 = vector.load %arg9[%c0_33, %c0_34, %c0_35] : memref<1x8x128xf32, #tpu.memory_space<vmem>>, vector<1x8x128xf32>
      tpu.vector_store %arg9[%c0_33, %c0_34, %c0_35], %78 {strides = array<i32>} : memref<1x8x128xf32, #tpu.memory_space<vmem>>, vector<1x8x128xf32>,
    } else {
    }
    return
  }
  func.func @transform_0(%arg0: i32, %arg1: i32) -> (i32, i32) {
    %c0_i32 = arith.constant 0 : i32
    return %arg0, %arg1 : i32, i32
  }
  func.func @transform_1(%arg0: i32, %arg1: i32) -> (i32, i32) {
    %c0_i32 = arith.constant 0 : i32
    %c0_i32_0 = arith.constant 0 : i32
    %c0_i32_1 = arith.constant 0 : i32
    return %c0_i32, %c0_i32_0 : i32, i32
  }
  func.func @transform_2(%arg0: i32, %arg1: i32) -> (i32, i32) {
    %c0_i32 = arith.constant 0 : i32
    %c0_i32_0 = arith.constant 0 : i32
    %c0_i32_1 = arith.constant 0 : i32
    return %c0_i32, %c0_i32_0 : i32, i32
  }
  func.func @transform_3(%arg0: i32, %arg1: i32) -> (i32, i32) {
    %c0_i32 = arith.constant 0 : i32
    %c0_i32_0 = arith.constant 0 : i32
    %c0_i32_1 = arith.constant 0 : i32
    return %c0_i32, %c0_i32_0 : i32, i32
  }
  func.func @transform_4(%arg0: i32, %arg1: i32) -> (i32, i32) {
    %c0_i32 = arith.constant 0 : i32
    %c0_i32_0 = arith.constant 0 : i32
    %c0_i32_1 = arith.constant 0 : i32
    return %c0_i32, %c0_i32_0 : i32, i32
  }
  func.func @transform_5(%arg0: i32, %arg1: i32) -> (i32, i32) {
    %c0_i32 = arith.constant 0 : i32
    %c0_i32_0 = arith.constant 0 : i32
    return %arg0, %c0_i32 : i32, i32
  }
  func.func @transform_6(%arg0: i32, %arg1: i32) -> (i32, i32) {
    %c0_i32 = arith.constant 0 : i32
    %c0_i32_0 = arith.constant 0 : i32
    return %arg0, %c0_i32 : i32, i32
  }
  func.func @transform_7(%arg0: i32, %arg1: i32) -> (i32, i32, i32) {
    %c0_i32 = arith.constant 0 : i32
    %c0_i32_0 = arith.constant 0 : i32
    %c0_i32_1 = arith.constant 0 : i32
    return %arg0, %c0_i32, %c0_i32_0 : i32, i32, i32
  }
}

module attributes {stable_mosaic.version = 11 : i64} {
  func.func @_token_cls_kernel(%arg0: i32, %arg1: i32, %arg2: memref<16x32xf32, #tpu.memory_space<vmem>>, %arg3: memref<32x32xbf16, #tpu.memory_space<vmem>>, %arg4: memref<1x32xf32, #tpu.memory_space<vmem>>, %arg5: memref<32x128xbf16, #tpu.memory_space<vmem>>, %arg6: memref<1x128xf32, #tpu.memory_space<vmem>>, %arg7: memref<16x1xi32, #tpu.memory_space<vmem>>, %arg8: memref<16x128xbf16, #tpu.memory_space<vmem>>, %arg9: memref<1x8x128xf32, #tpu.memory_space<vmem>>, %arg10: memref<16x32xf32, #tpu.memory_space<vmem>>) attributes {dimension_semantics = [#tpu.dimension_semantics<parallel>, #tpu.dimension_semantics<arbitrary>], iteration_bounds = array<i64: 2, 1>, scalar_prefetch = 0 : i64, scratch_operands = 1 : i64, tpu.core_type = #tpu.core_type<tc>, window_params = [{transform_indices = @transform_0, window_bounds = array<i64: 16, 32>}, {pipeline_mode = #tpu.pipeline_mode<synchronous>, transform_indices = @transform_1, window_bounds = array<i64: 32, 32>}, {pipeline_mode = #tpu.pipeline_mode<synchronous>, transform_indices = @transform_2, window_bounds = array<i64: 1, 32>}, {pipeline_mode = #tpu.pipeline_mode<synchronous>, transform_indices = @transform_3, window_bounds = array<i64: 32, 128>}, {pipeline_mode = #tpu.pipeline_mode<synchronous>, transform_indices = @transform_4, window_bounds = array<i64: 1, 128>}, {transform_indices = @transform_5, window_bounds = array<i64: 16, 1>}, {transform_indices = @transform_6, window_bounds = array<i64: 16, 128>}, {transform_indices = @transform_7, window_bounds = array<i64: 1, 8, 128>}]} {
    %c0 = arith.constant 0 : index
    %c0_0 = arith.constant 0 : index
    %0 = vector.load %arg2[%c0, %c0_0] : memref<16x32xf32, #tpu.memory_space<vmem>>, vector<16x32xf32>
    %1 = arith.truncf %0 : vector<16x32xf32> to vector<16x32xbf16>
    %c0_1 = arith.constant 0 : index
    %c0_2 = arith.constant 0 : index
    %2 = vector.load %arg3[%c0_1, %c0_2] : memref<32x32xbf16, #tpu.memory_space<vmem>>, vector<32x32xbf16>
    %cst = arith.constant dense<0.000000e+00> : vector<16x32xf32>
    %3 = tpu.matmul %1, %2, %cst {dimension_numbers = #tpu.dot_dimension_numbers<[1], [0], [0], [1], [0, 0, 1, 1], [], []>} : vector<16x32xbf16>, vector<32x32xbf16>, vector<16x32xf32> -> vector<16x32xf32>
    %c0_i32 = arith.constant 0 : i32
    %4 = arith.cmpi eq, %arg1, %c0_i32 : i32
    %5 = arith.extui %4 : i1 to i32
    %c0_i32_3 = arith.constant 0 : i32
    %6 = arith.cmpi ne, %5, %c0_i32_3 : i32
    scf.if %6 {
      %c0_8 = arith.constant 0 : index
      %c0_9 = arith.constant 0 : index
      %13 = vector.load %arg10[%c0_8, %c0_9] : memref<16x32xf32, #tpu.memory_space<vmem>>, vector<16x32xf32>
      tpu.vector_store %arg10[%c0_8, %c0_9], %3 {strides = array<i32>} : memref<16x32xf32, #tpu.memory_space<vmem>>, vector<16x32xf32>,
    } else {
    }
    %c0_i32_4 = arith.constant 0 : i32
    %7 = arith.cmpi sgt, %arg1, %c0_i32_4 : i32
    %8 = arith.extui %7 : i1 to i32
    %c0_i32_5 = arith.constant 0 : i32
    %9 = arith.cmpi ne, %8, %c0_i32_5 : i32
    scf.if %9 {
      %c0_8 = arith.constant 0 : index
      %c0_9 = arith.constant 0 : index
      %13 = vector.load %arg10[%c0_8, %c0_9] : memref<16x32xf32, #tpu.memory_space<vmem>>, vector<16x32xf32>
      %14 = arith.addf %13, %3 : vector<16x32xf32>
      %c0_10 = arith.constant 0 : index
      %c0_11 = arith.constant 0 : index
      %15 = vector.load %arg10[%c0_10, %c0_11] : memref<16x32xf32, #tpu.memory_space<vmem>>, vector<16x32xf32>
      tpu.vector_store %arg10[%c0_10, %c0_11], %14 {strides = array<i32>} : memref<16x32xf32, #tpu.memory_space<vmem>>, vector<16x32xf32>,
    } else {
    }
    %c0_i32_6 = arith.constant 0 : i32
    %10 = arith.cmpi eq, %arg1, %c0_i32_6 : i32
    %11 = arith.extui %10 : i1 to i32
    %c0_i32_7 = arith.constant 0 : i32
    %12 = arith.cmpi ne, %11, %c0_i32_7 : i32
    scf.if %12 {
      %c0_8 = arith.constant 0 : index
      %c0_9 = arith.constant 0 : index
      %13 = vector.load %arg10[%c0_8, %c0_9] : memref<16x32xf32, #tpu.memory_space<vmem>>, vector<16x32xf32>
      %c0_10 = arith.constant 0 : index
      %c0_11 = arith.constant 0 : index
      %14 = vector.load %arg4[%c0_10, %c0_11] : memref<1x32xf32, #tpu.memory_space<vmem>>, vector<1x32xf32>
      %15 = vector.broadcast %14 : vector<1x32xf32> to vector<16x32xf32>
      %16 = arith.addf %13, %15 : vector<16x32xf32>
      %17 = math.tanh %16 : vector<16x32xf32>
      %18 = arith.truncf %17 : vector<16x32xf32> to vector<16x32xbf16>
      %c0_12 = arith.constant 0 : index
      %c0_13 = arith.constant 0 : index
      %19 = vector.load %arg5[%c0_12, %c0_13] : memref<32x128xbf16, #tpu.memory_space<vmem>>, vector<32x128xbf16>
      %cst_14 = arith.constant dense<0.000000e+00> : vector<16x128xf32>
      %20 = tpu.matmul %18, %19, %cst_14 {dimension_numbers = #tpu.dot_dimension_numbers<[1], [0], [0], [1], [0, 0, 1, 1], [], []>} : vector<16x32xbf16>, vector<32x128xbf16>, vector<16x128xf32> -> vector<16x128xf32>
      %c0_15 = arith.constant 0 : index
      %c0_16 = arith.constant 0 : index
      %21 = vector.load %arg6[%c0_15, %c0_16] : memref<1x128xf32, #tpu.memory_space<vmem>>, vector<1x128xf32>
      %22 = vector.broadcast %21 : vector<1x128xf32> to vector<16x128xf32>
      %23 = arith.addf %20, %22 : vector<16x128xf32>
      %24 = arith.truncf %23 : vector<16x128xf32> to vector<16x128xbf16>
      %c0_17 = arith.constant 0 : index
      %c0_18 = arith.constant 0 : index
      %25 = vector.load %arg8[%c0_17, %c0_18] : memref<16x128xbf16, #tpu.memory_space<vmem>>, vector<16x128xbf16>
      tpu.vector_store %arg8[%c0_17, %c0_18], %24 {strides = array<i32>} : memref<16x128xbf16, #tpu.memory_space<vmem>>, vector<16x128xbf16>,
      %cst_19 = arith.constant dense<0xFF800000> : vector<16xf32>
      %26 = vector.multi_reduction <maximumf>, %23, %cst_19 [1] : vector<16x128xf32> to vector<16xf32>
      %27 = vector.shape_cast %26 : vector<16xf32> to vector<16x1xf32>
      %28 = vector.broadcast %27 : vector<16x1xf32> to vector<16x128xf32>
      %29 = arith.subf %23, %28 : vector<16x128xf32>
      %30 = math.exp %29 : vector<16x128xf32>
      %cst_20 = arith.constant dense<0.000000e+00> : vector<16xf32>
      %31 = vector.multi_reduction <add>, %30, %cst_20 [1] : vector<16x128xf32> to vector<16xf32>
      %32 = vector.shape_cast %31 : vector<16xf32> to vector<16x1xf32>
      %33 = math.log %32 : vector<16x1xf32>
      %34 = arith.addf %33, %27 : vector<16x1xf32>
      %c0_21 = arith.constant 0 : index
      %c0_22 = arith.constant 0 : index
      %35 = vector.load %arg7[%c0_21, %c0_22] : memref<16x1xi32, #tpu.memory_space<vmem>>, vector<16x1xi32>
      %36 = tpu.iota {dimensions = array<i32: 1>} : vector<16x128xi32>
      %37 = vector.broadcast %35 : vector<16x1xi32> to vector<16x128xi32>
      %38 = arith.cmpi eq, %36, %37 : vector<16x128xi32>
      %cst_23 = arith.constant 0.000000e+00 : f32
      %39 = vector.broadcast %cst_23 : f32 to vector<16x128xf32>
      %40 = arith.select %38, %23, %39 : vector<16x128xi1>, vector<16x128xf32>
      %cst_24 = arith.constant dense<0.000000e+00> : vector<16xf32>
      %41 = vector.multi_reduction <add>, %40, %cst_24 [1] : vector<16x128xf32> to vector<16xf32>
      %42 = vector.shape_cast %41 : vector<16xf32> to vector<16x1xf32>
      %c0_i32_25 = arith.constant 0 : i32
      %43 = vector.broadcast %c0_i32_25 : i32 to vector<16x1xi32>
      %44 = arith.cmpi sge, %35, %43 : vector<16x1xi32>
      %c8_i32 = arith.constant 8 : i32
      %45 = vector.broadcast %c8_i32 : i32 to vector<16x1xi32>
      %46 = arith.cmpi slt, %35, %45 : vector<16x1xi32>
      %47 = arith.andi %44, %46 : vector<16x1xi1>
      %48 = arith.subf %34, %42 : vector<16x1xf32>
      %cst_26 = arith.constant 0.000000e+00 : f32
      %49 = vector.broadcast %cst_26 : f32 to vector<16x1xf32>
      %50 = arith.select %47, %48, %49 : vector<16x1xi1>, vector<16x1xf32>
      %51 = vector.shape_cast %50 : vector<16x1xf32> to vector<1x16x1xf32>
      %cst_27 = arith.constant dense<0.000000e+00> : vector<1xf32>
      %52 = vector.multi_reduction <add>, %51, %cst_27 [1, 2] : vector<1x16x1xf32> to vector<1xf32>
      %53 = vector.shape_cast %52 : vector<1xf32> to vector<1x1x1xf32>
      %54 = vector.extract %53[0, 0, 0] : f32 from vector<1x1x1xf32>
      %55 = arith.extui %47 : vector<16x1xi1> to vector<16x1xi32>
      %56 = arith.sitofp %55 : vector<16x1xi32> to vector<16x1xf32>
      %57 = vector.shape_cast %56 : vector<16x1xf32> to vector<1x16x1xf32>
      %cst_28 = arith.constant dense<0.000000e+00> : vector<1xf32>
      %58 = vector.multi_reduction <add>, %57, %cst_28 [1, 2] : vector<1x16x1xf32> to vector<1xf32>
      %59 = vector.shape_cast %58 : vector<1xf32> to vector<1x1x1xf32>
      %60 = vector.extract %59[0, 0, 0] : f32 from vector<1x1x1xf32>
      %61 = tpu.iota {dimensions = array<i32: 0>} : vector<8x128xi32>
      %62 = tpu.iota {dimensions = array<i32: 1>} : vector<8x128xi32>
      %c0_i32_29 = arith.constant 0 : i32
      %63 = vector.broadcast %c0_i32_29 : i32 to vector<8x128xi32>
      %64 = arith.cmpi eq, %61, %63 : vector<8x128xi32>
      %c0_i32_30 = arith.constant 0 : i32
      %65 = vector.broadcast %c0_i32_30 : i32 to vector<8x128xi32>
      %66 = arith.cmpi eq, %62, %65 : vector<8x128xi32>
      %67 = arith.andi %64, %66 : vector<8x128xi1>
      %c0_i32_31 = arith.constant 0 : i32
      %68 = vector.broadcast %c0_i32_31 : i32 to vector<8x128xi32>
      %69 = arith.cmpi eq, %61, %68 : vector<8x128xi32>
      %c1_i32 = arith.constant 1 : i32
      %70 = vector.broadcast %c1_i32 : i32 to vector<8x128xi32>
      %71 = arith.cmpi eq, %62, %70 : vector<8x128xi32>
      %72 = arith.andi %69, %71 : vector<8x128xi1>
      %cst_32 = arith.constant 0.000000e+00 : f32
      %73 = vector.broadcast %60 : f32 to vector<8x128xf32>
      %74 = vector.broadcast %cst_32 : f32 to vector<8x128xf32>
      %75 = arith.select %72, %73, %74 : vector<8x128xi1>, vector<8x128xf32>
      %76 = vector.broadcast %54 : f32 to vector<8x128xf32>
      %77 = arith.select %67, %76, %75 : vector<8x128xi1>, vector<8x128xf32>
      %78 = vector.shape_cast %77 : vector<8x128xf32> to vector<1x8x128xf32>
      %c0_33 = arith.constant 0 : index
      %c0_34 = arith.constant 0 : index
      %c0_35 = arith.constant 0 : index
      %79 = vector.load %arg9[%c0_33, %c0_34, %c0_35] : memref<1x8x128xf32, #tpu.memory_space<vmem>>, vector<1x8x128xf32>
      tpu.vector_store %arg9[%c0_33, %c0_34, %c0_35], %78 {strides = array<i32>} : memref<1x8x128xf32, #tpu.memory_space<vmem>>, vector<1x8x128xf32>,
    } else {
    }
    return
  }
  func.func @transform_0(%arg0: i32, %arg1: i32) -> (i32, i32) {
    %c0_i32 = arith.constant 0 : i32
    return %arg0, %arg1 : i32, i32
  }
  func.func @transform_1(%arg0: i32, %arg1: i32) -> (i32, i32) {
    %c0_i32 = arith.constant 0 : i32
    %c0_i32_0 = arith.constant 0 : i32
    %c0_i32_1 = arith.constant 0 : i32
    return %c0_i32, %c0_i32_0 : i32, i32
  }
  func.func @transform_2(%arg0: i32, %arg1: i32) -> (i32, i32) {
    %c0_i32 = arith.constant 0 : i32
    %c0_i32_0 = arith.constant 0 : i32
    %c0_i32_1 = arith.constant 0 : i32
    return %c0_i32, %c0_i32_0 : i32, i32
  }
  func.func @transform_3(%arg0: i32, %arg1: i32) -> (i32, i32) {
    %c0_i32 = arith.constant 0 : i32
    %c0_i32_0 = arith.constant 0 : i32
    %c0_i32_1 = arith.constant 0 : i32
    return %c0_i32, %c0_i32_0 : i32, i32
  }
  func.func @transform_4(%arg0: i32, %arg1: i32) -> (i32, i32) {
    %c0_i32 = arith.constant 0 : i32
    %c0_i32_0 = arith.constant 0 : i32
    %c0_i32_1 = arith.constant 0 : i32
    return %c0_i32, %c0_i32_0 : i32, i32
  }
  func.func @transform_5(%arg0: i32, %arg1: i32) -> (i32, i32) {
    %c0_i32 = arith.constant 0 : i32
    %c0_i32_0 = arith.constant 0 : i32
    return %arg0, %c0_i32 : i32, i32
  }
  func.func @transform_6(%arg0: i32, %arg1: i32) -> (i32, i32) {
    %c0_i32 = arith.constant 0 : i32
    %c0_i32_0 = arith.constant 0 : i32
    return %arg0, %c0_i32 : i32, i32
  }
  func.func @transform_7(%arg0: i32, %arg1: i32) -> (i32, i32, i32) {
    %c0_i32 = arith.constant 0 : i32
    %c0_i32_0 = arith.constant 0 : i32
    %c0_i32_1 = arith.constant 0 : i32
    return %arg0, %c0_i32, %c0_i32_0 : i32, i32, i32
  }
}

</mosaic_0001>

<llo_original>
// kernel: tpu_custom_call.1
$region0: #{tpu_custom_call.1}
  #allocation0 [shape = 'u32[]', space=smem, size = 0x4, offset = 0x4, fixed_abs, tag = 'smem constant byte address 0x4 - core index']
  #allocation1 [shape = 'u32[144,128]{1,0:T(1,128)}', space=vmem, size = 0x12000, scoped, tag = 'internal scratch']
  #allocation2 [shape = 'f32[16,32]{1,0:T(8,128)}', space=vmem, size = 0x2000, scoped, tag = 'scratch operand']
  %s0 = inlined_call_operand.vmem [shape: f32[32,32], index: 0, kind: input, shape index: {}]
  %s1 = inlined_call_operand.hbm [shape: bf16[32,32], index: 1, kind: input, shape index: {}]
  %s2 = inlined_call_operand.vmem [shape: f32[1,32], index: 2, kind: input, shape index: {}]
  %s3 = inlined_call_operand.hbm [shape: bf16[32,128], index: 3, kind: input, shape index: {}]
  %s4 = inlined_call_operand.vmem [shape: f32[1,128], index: 4, kind: input, shape index: {}]
  %s5 = inlined_call_operand.vmem [shape: s32[32,1], index: 5, kind: input, shape index: {}]
  %s6 = inlined_call_operand.hbm [shape: bf16[32,128], index: 6, kind: output, shape index: {0}]
  %s7 = inlined_call_operand.hbm [shape: f32[2,8,128], index: 7, kind: output, shape index: {1}]
  %8 = xla_tuple %s6, %s7
  %s9 = sld [smem:[#allocation0]]
  $region85: #{tpu_custom_call.1} parent=0
    _
  %s11 = ssub.s32 1, %s9
  %s12 = scalar_select 0, %s11, %s9
  $region1: #{tpu_custom_call.1} parent=0
    #allocation3 [shape = 'u8[8192]{0}', space=vmem, size = 0x2000, scoped, tag = 'input window, operand 1, single buffered']
    #allocation4 [shape = 's32[2]{0}', space=sflag, size = 0x8, scoped, tag = 'scoped memory for tpu_custom_call.1']
    #allocation5 [shape = 's32[2]{0}', space=sflag, size = 0x8, scoped, tag = 'scoped memory for tpu_custom_call.1']
    #allocation6 [shape = 'u8[8192]{0}', space=vmem, size = 0x2000, scoped, tag = 'input window, operand 3, single buffered']
    #allocation7 [shape = 's32[1]{0}', space=sflag, size = 0x4, scoped, tag = 'scoped memory for tpu_custom_call.1']
    #allocation8 [shape = 'u8[8192]{0}', space=vmem, size = 0x2000, scoped, tag = 'output window, operand 0']
    #allocation9 [shape = 'u8[8192]{0}', space=vmem, size = 0x2000, scoped, tag = 'output window, operand 1']
    #allocation10 [shape = 's32[2]{0}', space=sflag, size = 0x8, scoped, tag = 'scoped memory for tpu_custom_call.1']
    %13 = vsyncpa [#allocation4], 0
    %14 = vsyncpa [#allocation7], 0
    %15 = vsyncpa [#allocation5], 0
    %s16 = scalar_lea.sflag [#allocation5], 1
    %17 = vsyncpa %s16, 0
    %18 = vsyncpa [#allocation10], 0
    %s19 = scalar_lea.sflag [#allocation10], 1
    %20 = vsyncpa %s19, 0
    loop: start=0, step=1, limit=4
    $region2: #{tpu_custom_call.1} parent=1 // loop_pre_header
      _
    $region3: #{tpu_custom_call.1} parent=1 // loop_header
      %s22 = sphi 0, %s26
      %p23 = scmp.ge.s32.totalorder %s22, 4
      %s29 = sphi 0, %s41
      %s30 = sphi 0, %s37
      %s31 = sphi 0, %s29
      %s32 = sphi 0, %s30
      %s33 = sphi 0, %s31
      %s34 = sphi 0, %s32
      %s46 = sphi 0, %s48
      %s49 = sphi 0, %s46
      %s50 = sphi 0, %s49
      %s66 = sphi 0, %s50
      %s70 = sphi 0, %s70
      %s72 = sphi 0, %s70
      %s73 = sphi 0, %s72
      %s87 = sphi 0, %s73
      %s91 = sphi 0, %s91
      %s93 = sphi 0, %s91
      %s94 = sphi 0, %s93
      %s108 = sphi 0, %s94
      %s112 = sphi 0, %s112
      %s114 = sphi 0, %s112
      %s115 = sphi 0, %s114
      %s129 = sphi 0, %s115
      %s133 = sphi 0, %s133
      %s135 = sphi 0, %s133
      %s136 = sphi 0, %s135
      %s150 = sphi 0, %s136
      %s156 = sphi 0, %s158
      %s159 = sphi 0, %s156
      %s160 = sphi 0, %s159
      %s176 = sphi 0, %s160
      %s182 = sphi 0, %s184
      %s185 = sphi 0, %s182
      %s186 = sphi 0, %s185
      %s202 = sphi 0, %s186
      %s208 = sphi 0, %s210
      %s211 = sphi 0, %s208
      %s212 = sphi 0, %s211
      %s228 = sphi 0, %s212
    $region4: #{tpu_custom_call.1} parent=1 // loop_header_branch
      %25 = sbr.rel (%p23) target = $region8
    $region5: #{tpu_custom_call.1} parent=1 // loop_body
      %s27 = ssub.s32 %s22, 1
      %s28 = ssub.s32 %s22, 2
      %s35 = sadd.s32 1, %s30
      %p36 = scmp.ge.s32.totalorder %s35, 1
      %s37 = scalar_select %p36, 0, %s35
      %s38 = sadd.s32 1, %s29
      %s39 = scalar_select %p36, %s38, %s29
      %p40 = scmp.ge.s32.totalorder %s39, 2
      %s41 = scalar_select %p40, 0, %s39
      %s42 = ssub.s32 %s29, %s41
      %s43 = ssub.s32 %s30, %s37
      %s44 = sor.u32 %s42, %s43
      %p45 = scmp.eq.s32.totalorder %s44, 0
      %s47 = sadd.s32 %s46, 1
      %s48 = scalar_select %p45, %s46, %s47
      %p51 = pneg %p45
      %p52 = scmp.eq.s32.totalorder %s22, 1
      %p53 = por %p51, %p52
      %p54 = scmp.ne.s32.totalorder %s46, %s49
      %p55 = scmp.eq.s32.totalorder %s22, 0
      %p56 = por %p54, %p55
      %p57 = scmp.ne.s32.totalorder %s46, %s49
      %p58 = scmp.eq.s32.totalorder %s27, 1
      %p59 = por %p57, %p58
      %p60 = scmp.ne.s32.totalorder %s49, %s50
      %p61 = scmp.eq.s32.totalorder %s27, 0
      %p62 = por %p60, %p61
      %p63 = scmp.ne.s32.totalorder %s49, %s50
      %p64 = scmp.eq.s32.totalorder %s28, 1
      %p65 = por %p63, %p64
      %p67 = scmp.ne.s32.totalorder %s50, %s66
      %p68 = scmp.eq.s32.totalorder %s28, 0
      %p69 = por %p67, %p68
      %s71 = sadd.s32 %s70, 1
      %p74 = scmp.eq.s32.totalorder %s22, 1
      %p75 = scmp.ne.s32.totalorder %s70, %s72
      %p76 = scmp.eq.s32.totalorder %s22, 0
      %p77 = por %p75, %p76
      %p78 = scmp.ne.s32.totalorder %s70, %s72
      %p79 = scmp.eq.s32.totalorder %s27, 1
      %p80 = por %p78, %p79
      %p81 = scmp.ne.s32.totalorder %s72, %s73
      %p82 = scmp.eq.s32.totalorder %s27, 0
      %p83 = por %p81, %p82
      %p84 = scmp.ne.s32.totalorder %s72, %s73
      %p85 = scmp.eq.s32.totalorder %s28, 1
      %p86 = por %p84, %p85
      %p88 = scmp.ne.s32.totalorder %s73, %s87
      %p89 = scmp.eq.s32.totalorder %s28, 0
      %p90 = por %p88, %p89
      %s92 = sadd.s32 %s91, 1
      %p95 = scmp.eq.s32.totalorder %s22, 1
      %p96 = scmp.ne.s32.totalorder %s91, %s93
      %p97 = scmp.eq.s32.totalorder %s22, 0
      %p98 = por %p96, %p97
      %p99 = scmp.ne.s32.totalorder %s91, %s93
      %p100 = scmp.eq.s32.totalorder %s27, 1
      %p101 = por %p99, %p100
      %p102 = scmp.ne.s32.totalorder %s93, %s94
      %p103 = scmp.eq.s32.totalorder %s27, 0
      %p104 = por %p102, %p103
      %p105 = scmp.ne.s32.totalorder %s93, %s94
      %p106 = scmp.eq.s32.totalorder %s28, 1
      %p107 = por %p105, %p106
      %p109 = scmp.ne.s32.totalorder %s94, %s108
      %p110 = scmp.eq.s32.totalorder %s28, 0
      %p111 = por %p109, %p110
      %s113 = sadd.s32 %s112, 1
      %p116 = scmp.eq.s32.totalorder %s22, 1
      %p117 = scmp.ne.s32.totalorder %s112, %s114
      %p118 = scmp.eq.s32.totalorder %s22, 0
      %p119 = por %p117, %p118
      %p120 = scmp.ne.s32.totalorder %s112, %s114
      %p121 = scmp.eq.s32.totalorder %s27, 1
      %p122 = por %p120, %p121
      %p123 = scmp.ne.s32.totalorder %s114, %s115
      %p124 = scmp.eq.s32.totalorder %s27, 0
      %p125 = por %p123, %p124
      %p126 = scmp.ne.s32.totalorder %s114, %s115
      %p127 = scmp.eq.s32.totalorder %s28, 1
      %p128 = por %p126, %p127
      %p130 = scmp.ne.s32.totalorder %s115, %s129
      %p131 = scmp.eq.s32.totalorder %s28, 0
      %p132 = por %p130, %p131
      %s134 = sadd.s32 %s133, 1
      %p137 = scmp.eq.s32.totalorder %s22, 1
      %p138 = scmp.ne.s32.totalorder %s133, %s135
      %p139 = scmp.eq.s32.totalorder %s22, 0
      %p140 = por %p138, %p139
      %p141 = scmp.ne.s32.totalorder %s133, %s135
      %p142 = scmp.eq.s32.totalorder %s27, 1
      %p143 = por %p141, %p142
      %p144 = scmp.ne.s32.totalorder %s135, %s136
      %p145 = scmp.eq.s32.totalorder %s27, 0
      %p146 = por %p144, %p145
      %p147 = scmp.ne.s32.totalorder %s135, %s136
      %p148 = scmp.eq.s32.totalorder %s28, 1
      %p149 = por %p147, %p148
      %p151 = scmp.ne.s32.totalorder %s136, %s150
      %p152 = scmp.eq.s32.totalorder %s28, 0
      %p153 = por %p151, %p152
      %s154 = ssub.s32 %s29, %s41
      %p155 = scmp.eq.s32.totalorder %s154, 0
      %s157 = sadd.s32 %s156, 1
      %s158 = scalar_select %p155, %s156, %s157
      %p161 = pneg %p155
      %p162 = scmp.eq.s32.totalorder %s22, 1
      %p163 = por %p161, %p162
      %p164 = scmp.ne.s32.totalorder %s156, %s159
      %p165 = scmp.eq.s32.totalorder %s22, 0
      %p166 = por %p164, %p165
      %p167 = scmp.ne.s32.totalorder %s156, %s159
      %p168 = scmp.eq.s32.totalorder %s27, 1
      %p169 = por %p167, %p168
      %p170 = scmp.ne.s32.totalorder %s159, %s160
      %p171 = scmp.eq.s32.totalorder %s27, 0
      %p172 = por %p170, %p171
      %p173 = scmp.ne.s32.totalorder %s159, %s160
      %p174 = scmp.eq.s32.totalorder %s28, 1
      %p175 = por %p173, %p174
      %p177 = scmp.ne.s32.totalorder %s160, %s176
      %p178 = scmp.eq.s32.totalorder %s28, 0
      %p179 = por %p177, %p178
      %s180 = ssub.s32 %s29, %s41
      %p181 = scmp.eq.s32.totalorder %s180, 0
      %s183 = sadd.s32 %s182, 1
      %s184 = scalar_select %p181, %s182, %s183
      %p187 = pneg %p181
      %p188 = scmp.eq.s32.totalorder %s22, 1
      %p189 = por %p187, %p188
      %p190 = scmp.ne.s32.totalorder %s182, %s185
      %p191 = scmp.eq.s32.totalorder %s22, 0
      %p192 = por %p190, %p191
      %p193 = scmp.ne.s32.totalorder %s182, %s185
      %p194 = scmp.eq.s32.totalorder %s27, 1
      %p195 = por %p193, %p194
      %p196 = scmp.ne.s32.totalorder %s185, %s186
      %p197 = scmp.eq.s32.totalorder %s27, 0
      %p198 = por %p196, %p197
      %p199 = scmp.ne.s32.totalorder %s185, %s186
      %p200 = scmp.eq.s32.totalorder %s28, 1
      %p201 = por %p199, %p200
      %p203 = scmp.ne.s32.totalorder %s186, %s202
      %p204 = scmp.eq.s32.totalorder %s28, 0
      %p205 = por %p203, %p204
      %s206 = ssub.s32 %s29, %s41
      %p207 = scmp.eq.s32.totalorder %s206, 0
      %s209 = sadd.s32 %s208, 1
      %s210 = scalar_select %p207, %s208, %s209
      %p213 = pneg %p207
      %p214 = scmp.eq.s32.totalorder %s22, 1
      %p215 = por %p213, %p214
      %p216 = scmp.ne.s32.totalorder %s208, %s211
      %p217 = scmp.eq.s32.totalorder %s22, 0
      %p218 = por %p216, %p217
      %p219 = scmp.ne.s32.totalorder %s208, %s211
      %p220 = scmp.eq.s32.totalorder %s27, 1
      %p221 = por %p219, %p220
      %p222 = scmp.ne.s32.totalorder %s211, %s212
      %p223 = scmp.eq.s32.totalorder %s27, 0
      %p224 = por %p222, %p223
      %p225 = scmp.ne.s32.totalorder %s211, %s212
      %p226 = scmp.eq.s32.totalorder %s28, 1
      %p227 = por %p225, %p226
      %p229 = scmp.ne.s32.totalorder %s212, %s228
      %p230 = scmp.eq.s32.totalorder %s28, 0
      %p231 = por %p229, %p230
      %p232 = scmp.le.s32.totalorder 1, %s22
      %p233 = scmp.lt.s32.totalorder %s22, 3
      %p234 = pnand %p232, %p233
      %p235 = pneg %p234
      // Predicated region
      $region9: #{tpu_custom_call.1} parent=5 // pred_check
        _
      $region10: #{tpu_custom_call.1} parent=5 // pred_check_branch
        %237 = sbr.rel (%p234) target = $region12
      $region11: #{tpu_custom_call.1} parent=5 // pred_region
        %s238 = ssub.s32 %s22, 1
        // Predicated region
        $region13: #{tpu_custom_call.1} parent=11 // pred_check
          %p239 = pneg %p83
        $region14: #{tpu_custom_call.1} parent=11 // pred_check_branch
          %241 = sbr.rel (%p239) target = $region16
        $region15: #{tpu_custom_call.1} parent=11 // pred_region
          %s243 = ssub.s32 256, 256
          %244 = vsyncadd [#allocation4], %s243
          %s245 = sshll.u32 [#allocation3], 4
          %s246 = int_to_ptr.vmem [resolvable:$true] %s245
          %251 = dma.hbm_to_vmem [thread:$0]  %s1, 256, %s246, [#allocation4], 64, 64, 4
        $region16: #{tpu_custom_call.1} parent=11 // pred_fallthru
          _
        // Predicated region
        $region17: #{tpu_custom_call.1} parent=11 // pred_check
          %p252 = pneg %p104
        $region18: #{tpu_custom_call.1} parent=11 // pred_check_branch
          %254 = sbr.rel (%p252) target = $region20
        $region19: #{tpu_custom_call.1} parent=11 // pred_region
          _
        $region20: #{tpu_custom_call.1} parent=11 // pred_fallthru
          _
        // Predicated region
        $region21: #{tpu_custom_call.1} parent=11 // pred_check
          %p255 = pneg %p125
        $region22: #{tpu_custom_call.1} parent=11 // pred_check_branch
          %257 = sbr.rel (%p255) target = $region24
        $region23: #{tpu_custom_call.1} parent=11 // pred_region
          %s259 = ssub.s32 256, 256
          %260 = vsyncadd [#allocation7], %s259
          %s261 = sshll.u32 [#allocation6], 4
          %s262 = int_to_ptr.vmem [resolvable:$true] %s261
          %267 = dma.hbm_to_vmem [thread:$0]  %s3, 256, %s262, [#allocation7], 64, 64, 4
        $region24: #{tpu_custom_call.1} parent=11 // pred_fallthru
          _
        // Predicated region
        $region25: #{tpu_custom_call.1} parent=11 // pred_check
          %p268 = pneg %p146
        $region26: #{tpu_custom_call.1} parent=11 // pred_check_branch
          %270 = sbr.rel (%p268) target = $region28
        $region27: #{tpu_custom_call.1} parent=11 // pred_region
          _
        $region28: #{tpu_custom_call.1} parent=11 // pred_fallthru
          _
      $region12: #{tpu_custom_call.1} parent=5 // pred_fallthru
        _
      %p271 = scmp.lt.s32.totalorder %s22, 2
      // Predicated region
      $region29: #{tpu_custom_call.1} parent=5 // pred_check
        %p272 = pneg %p271
      $region30: #{tpu_custom_call.1} parent=5 // pred_check_branch
        %274 = sbr.rel (%p272) target = $region32
      $region31: #{tpu_custom_call.1} parent=5 // pred_region
        // Predicated region
        $region33: #{tpu_custom_call.1} parent=31 // pred_check
          %p275 = pneg %p56
        $region34: #{tpu_custom_call.1} parent=31 // pred_check_branch
          %277 = sbr.rel (%p275) target = $region36
        $region35: #{tpu_custom_call.1} parent=31 // pred_region
          %s278 = smul.u32 2, %s29
          %p279 = scmp.lt.s32.totalorder %s278, 3
          %s280 = scalar_select %p279, %s278, 3
          %p281 = scmp.lt.s32.totalorder %s30, 0
          %s282 = scalar_select %p281, %s30, 0
          %s283 = sadd.s32 %s282, %s280
          %s284 = smul.addr %s283, 8
          %s285 = scalar_lea.vmem %s0, %s284
          %s286 = smul.u32 2, %s29
        $region36: #{tpu_custom_call.1} parent=31 // pred_fallthru
          _
        // Predicated region
        $region37: #{tpu_custom_call.1} parent=31 // pred_check
          %p287 = pneg %p166
        $region38: #{tpu_custom_call.1} parent=31 // pred_check_branch
          %289 = sbr.rel (%p287) target = $region40
        $region39: #{tpu_custom_call.1} parent=31 // pred_region
          %s290 = smul.u32 2, %s29
          %p291 = scmp.lt.s32.totalorder %s290, 3
          %s292 = scalar_select %p291, %s290, 3
          %s293 = smul.addr %s292, 8
          %s294 = scalar_lea.vmem %s5, %s293
          %s295 = smul.u32 2, %s29
        $region40: #{tpu_custom_call.1} parent=31 // pred_fallthru
          _
      $region32: #{tpu_custom_call.1} parent=5 // pred_fallthru
        _
      %p296 = scmp.le.s32.totalorder 1, %s22
      %p297 = scmp.lt.s32.totalorder %s22, 3
      %p298 = pnand %p296, %p297
      %p299 = pneg %p298
      // Predicated region
      $region41: #{tpu_custom_call.1} parent=5 // pred_check
        _
      $region42: #{tpu_custom_call.1} parent=5 // pred_check_branch
        %301 = sbr.rel (%p298) target = $region44
      $region43: #{tpu_custom_call.1} parent=5 // pred_region
        %s302 = ssub.s32 %s22, 1
        // Predicated region
        $region45: #{tpu_custom_call.1} parent=43 // pred_check
          %p303 = pneg %p83
        $region46: #{tpu_custom_call.1} parent=43 // pred_check_branch
          %305 = sbr.rel (%p303) target = $region48
        $region47: #{tpu_custom_call.1} parent=43 // pred_region
          %306 = dma.done [#allocation4], 256
        $region48: #{tpu_custom_call.1} parent=43 // pred_fallthru
          _
        // Predicated region
        $region49: #{tpu_custom_call.1} parent=43 // pred_check
          %p307 = pneg %p125
        $region50: #{tpu_custom_call.1} parent=43 // pred_check_branch
          %309 = sbr.rel (%p307) target = $region52
        $region51: #{tpu_custom_call.1} parent=43 // pred_region
          %310 = dma.done [#allocation7], 256
        $region52: #{tpu_custom_call.1} parent=43 // pred_fallthru
          _
        %s311 = smul.u32 2, %s31
        %p312 = scmp.lt.s32.totalorder %s311, 3
        %s313 = scalar_select %p312, %s311, 3
        %p314 = scmp.lt.s32.totalorder %s32, 0
        %s315 = scalar_select %p314, %s32, 0
        %s316 = sadd.s32 %s315, %s313
        %s317 = smul.addr %s316, 8
        %s318 = scalar_lea.vmem %s0, %s317
        %p319 = pneg %p62
        %p320 = pneg %p59
        %p321 = pneg %p83
        %p322 = pneg %p80
        %p323 = pneg %p104
        %p324 = pneg %p101
        %p325 = pneg %p125
        %p326 = pneg %p122
        %p327 = pneg %p146
        %p328 = pneg %p143
        %s329 = smul.u32 2, %s31
        %p330 = scmp.lt.s32.totalorder %s329, 3
        %s331 = scalar_select %p330, %s329, 3
        %s332 = smul.addr %s331, 8
        %s333 = scalar_lea.vmem %s5, %s332
        %p334 = pneg %p172
        %p335 = pneg %p169
        %p336 = pneg %p198
        %p337 = pneg %p195
        %s338 = sand.u32 %s185, 1
        %s339 = scalar_lea.sflag [#allocation5], %s338
        %s340 = sand.u32 %s185, 1
        %s341 = smul.addr %s340, 8
        %s342 = scalar_lea.vmem [#allocation8], %s341
        %p343 = pneg %p224
        %p344 = pneg %p221
        %s345 = sand.u32 %s211, 1
        %s346 = scalar_lea.sflag [#allocation10], %s345
        %s347 = sand.u32 %s211, 1
        %s348 = smul.addr %s347, 8
        %s349 = scalar_lea.vmem [#allocation9], %s348
        %s350 = smul.u32 2, %s31
        %p351 = scmp.lt.s32.totalorder %s350, 3
        %s352 = scalar_select %p351, %s350, 3
        %p353 = scmp.lt.s32.totalorder %s32, 0
        %s354 = scalar_select %p353, %s32, 0
        %s355 = sadd.s32 %s354, %s352
        %s356 = smul.addr %s355, 8
        %s357 = scalar_lea.vmem %s0, %s356
        %s358 = smul.u32 2, %s31
        %s359 = smul.u32 2, %s31
        %p360 = scmp.lt.s32.totalorder %s359, 3
        %s361 = scalar_select %p360, %s359, 3
        %s362 = smul.addr %s361, 8
        %s363 = scalar_lea.vmem %s5, %s362
        %s364 = smul.u32 2, %s31
        %s365 = smul.u32 2, %s31
        %v367 = vld [vmem:[%s357] sm:$0xff]
        %v368 = vld [vmem:[%s357 + $0x8] sm:$0xff]
        %v369 = vpack.c.bf16 %v368, %v367
        %v370 = vld [vmem:[#allocation3] sm:$0xf]
        %v371 = vld [vmem:[#allocation3 + $0x4] sm:$0xf]
        %v372 = vld [vmem:[#allocation3 + $0x8] sm:$0xf]
        %v373 = vld [vmem:[#allocation3 + $0xc] sm:$0xf]
        %v378 = vunpack.c.l.b16 %v370
        %v379 = vunpack.c.l.b16 %v371
        %v380 = vunpack.c.l.b16 %v372
        %v381 = vunpack.c.l.b16 %v373
        %v382 = vpack.c.b16 %v379, %v378
        %v383 = vpack.c.b16 %v381, %v380
        %vm386 = vcmask 261120
        %v388 = vsel %vm386, %v369, 0
        %390 = vmatprep.subr.bf16.mxu0 0
        %391 = vmatpush1.bf16.msra.mxu0 0
        %392 = vmatprep.subr.bf16.mxu0 0
        %393 = vmatpush1.bf16.msra.mxu0 0
        %394 = vmatprep.subr.bf16.mxu0 0
        %395 = vmatpush1.bf16.msra.mxu0 0
        %396 = vmatprep.subr.bf16.mxu0 0
        %397 = vmatpush1.bf16.msra.mxu0 0
        %398 = vmatprep.subr.bf16.mxu0 0
        %399 = vmatpush1.bf16.msra.mxu0 0
        %400 = vmatprep.subr.bf16.mxu0 0
        %401 = vmatpush1.bf16.msra.mxu0 0
        %402 = vmatprep.subr.bf16.mxu0 0
        %403 = vmatpush1.bf16.msra.mxu0 %v383
        %404 = vmatprep.subr.bf16.mxu0 0
        %405 = vmatpush1.bf16.msra.mxu0 %v382
        %406 = vmatprep.subr.bf16.mxu0 0
        %407 = vmatpush2.bf16.msra.mxu0 0
        %408 = vmatprep.subr.bf16.mxu0 0
        %409 = vmatpush2.bf16.msra.mxu0 0
        %410 = vmatprep.subr.bf16.mxu0 0
        %411 = vmatpush2.bf16.msra.mxu0 0
        %412 = vmatprep.subr.bf16.mxu0 0
        %413 = vmatpush2.bf16.msra.mxu0 0
        %414 = vmatprep.subr.bf16.mxu0 0
        %415 = vmatpush2.bf16.msra.mxu0 0
        %416 = vmatprep.subr.bf16.mxu0 0
        %417 = vmatpush2.bf16.msra.mxu0 0
        %418 = vmatprep.subr.bf16.mxu0 0
        %419 = vmatpush2.bf16.msra.mxu0 0
        %420 = vmatprep.subr.bf16.mxu0 0
        %421 = vmatpush2.bf16.msra.mxu0 0
        %422 = vmatprep.mubr.bf16.mxu0 0
        %423 = vmatmul.mubr.bf16.gmra.mxu0 %v388
        %v424 = vpop.f32.mrf.mxu0
        %v425 = vadd.f32 0.0, %v424
        %v426 = vpop.f32.mrf.mxu0
        %v427 = vpop.f32.mrf.mxu0
        %v428 = vadd.f32 0.0, %v427
        %v429 = vpop.f32.mrf.mxu0
        %430 = vdwg.mxu0
        %p431 = scmp.eq.s32.totalorder %s32, 0
        // Predicated region
        $region53: #{tpu_custom_call.1} parent=43 // pred_check
          %p432 = pneg %p431
        $region54: #{tpu_custom_call.1} parent=43 // pred_check_branch
          %434 = sbr.rel (%p432) target = $region56
        $region55: #{tpu_custom_call.1} parent=43 // pred_region
          %435 = vst.msk [vmem:[#allocation2] sm:$0xff] %vm386, %v425
          %436 = vst.msk [vmem:[#allocation2 + $0x8] sm:$0xff] %vm386, %v428
        $region56: #{tpu_custom_call.1} parent=43 // pred_fallthru
          _
        %p437 = scmp.gt.s32.totalorder %s32, 0
        // Predicated region
        $region57: #{tpu_custom_call.1} parent=43 // pred_check
          %p438 = pneg %p437
        $region58: #{tpu_custom_call.1} parent=43 // pred_check_branch
          %440 = sbr.rel (%p438) target = $region60
        $region59: #{tpu_custom_call.1} parent=43 // pred_region
          %v441 = vld [vmem:[#allocation2] sm:$0xff]
          %v442 = vld [vmem:[#allocation2 + $0x8] sm:$0xff]
          %v443 = vadd.f32 %v441, %v425
          %v444 = vadd.f32 %v442, %v428
          %445 = vst.msk [vmem:[#allocation2] sm:$0xff] %vm386, %v443
          %446 = vst.msk [vmem:[#allocation2 + $0x8] sm:$0xff] %vm386, %v444
        $region60: #{tpu_custom_call.1} parent=43 // pred_fallthru
          _
        // Predicated region
        $region61: #{tpu_custom_call.1} parent=43 // pred_check
          %p447 = pneg %p431
        $region62: #{tpu_custom_call.1} parent=43 // pred_check_branch
          %449 = sbr.rel (%p447) target = $region64
        $region63: #{tpu_custom_call.1} parent=43 // pred_region
          %v450 = vld [vmem:[#allocation2] sm:$0xff]
          %v451 = vld [vmem:[#allocation2 + $0x8] sm:$0xff]
          %v452 = vld [vmem:[%s2] sm:$0x1]
          %v454 = vlaneseq
          %v455 = vshrl.u32 %v454, 7
          %v456 = vsub.s32 0, %v455
          %v457 = vrot.slane %v452, %v456
          %v459 = vadd.f32 %v450, %v457
          %v460 = vadd.f32 %v451, %v457
          %v461 = vtanh.pop %v459
          %v462 = vtanh.pop %v460
          %v463 = vpack.c.bf16 %v462, %v461
          %v464 = vld [vmem:[#allocation6] sm:$0xf]
          %v465 = vld [vmem:[#allocation6 + $0x4] sm:$0xf]
          %v466 = vld [vmem:[#allocation6 + $0x8] sm:$0xf]
          %v467 = vld [vmem:[#allocation6 + $0xc] sm:$0xf]
          %v468 = vld [vmem:[%s4] sm:$0x1]
          %v470 = vlaneseq
          %v471 = vshrl.u32 %v470, 7
          %v472 = vsub.s32 0, %v471
          %v473 = vrot.slane %v468, %v472
          %v479 = vunpack.c.l.b16 %v464
          %v480 = vunpack.c.l.b16 %v465
          %v481 = vunpack.c.l.b16 %v466
          %v482 = vunpack.c.l.b16 %v467
          %v483 = vpack.c.b16 %v480, %v479
          %v484 = vpack.c.b16 %v482, %v481
          %v488 = vsel %vm386, %v463, 0
          %490 = vmatprep.subr.bf16.mxu0 0
          %491 = vmatpush1.bf16.msra.mxu0 0
          %492 = vmatprep.subr.bf16.mxu0 0
          %493 = vmatpush1.bf16.msra.mxu0 0
          %494 = vmatprep.subr.bf16.mxu0 0
          %495 = vmatpush1.bf16.msra.mxu0 0
          %496 = vmatprep.subr.bf16.mxu0 0
          %497 = vmatpush1.bf16.msra.mxu0 0
          %498 = vmatprep.subr.bf16.mxu0 0
          %499 = vmatpush1.bf16.msra.mxu0 0
          %500 = vmatprep.subr.bf16.mxu0 0
          %501 = vmatpush1.bf16.msra.mxu0 0
          %502 = vmatprep.subr.bf16.mxu0 0
          %503 = vmatpush1.bf16.msra.mxu0 %v484
          %504 = vmatprep.subr.bf16.mxu0 0
          %505 = vmatpush1.bf16.msra.mxu0 %v483
          %506 = vmatprep.subr.bf16.mxu0 0
          %507 = vmatpush2.bf16.msra.mxu0 0
          %508 = vmatprep.subr.bf16.mxu0 0
          %509 = vmatpush2.bf16.msra.mxu0 0
          %510 = vmatprep.subr.bf16.mxu0 0
          %511 = vmatpush2.bf16.msra.mxu0 0
          %512 = vmatprep.subr.bf16.mxu0 0
          %513 = vmatpush2.bf16.msra.mxu0 0
          %514 = vmatprep.subr.bf16.mxu0 0
          %515 = vmatpush2.bf16.msra.mxu0 0
          %516 = vmatprep.subr.bf16.mxu0 0
          %517 = vmatpush2.bf16.msra.mxu0 0
          %518 = vmatprep.subr.bf16.mxu0 0
          %519 = vmatpush2.bf16.msra.mxu0 0
          %520 = vmatprep.subr.bf16.mxu0 0
          %521 = vmatpush2.bf16.msra.mxu0 0
          %522 = vmatprep.mubr.bf16.mxu0 0
          %523 = vmatmul.mubr.bf16.gmra.mxu0 %v488
          %v524 = vpop.f32.mrf.mxu0
          %v525 = vadd.f32 %v473, %v524
          %v526 = vpop.f32.mrf.mxu0
          %v527 = vpop.f32.mrf.mxu0
          %v528 = vadd.f32 %v473, %v527
          %v529 = vpop.f32.mrf.mxu0
          %530 = vdwg.mxu0
          %v531 = vpack.c.bf16 %v528, %v525
          %v533 = vunpack.c.l.b16 %v531
          %v534 = vunpack.c.h.b16 %v531
          %v535 = vpack.c.b16 %v533, %v533
          %v536 = vpack.c.b16 %v534, %v534
          %539 = vst [vmem:[%s342] sm:$0xf] %v535
          %540 = vst [vmem:[%s342 + $0x4] sm:$0xf] %v536
          %541 = vmax.xlane.f32.xlu0 %v525
          %v542 = vpop.xlane.xlu0 %541
          %543 = vmax.xlane.f32.xlu0 %v528
          %v544 = vpop.xlane.xlu0 %543
          %v545 = vsub.f32 %v525, %v542
          %v546 = vsub.f32 %v528, %v544
          %v547 = vmul.f32 %v545, 1.442695
          %v548 = vpow.pop %v547
          %v549 = vmul.f32 %v546, 1.442695
          %v550 = vpow.pop %v549
          %551 = vadd.xlane.f32.xlu0 %v548
          %v552 = vpop.xlane.xlu0 %551
          %553 = vadd.xlane.f32.xlu0 %v550
          %v554 = vpop.xlane.xlu0 %553
          %v555 = vlog2.pop %v552
          %v556 = vmul.f32 %v555, 0.6931472
          %v557 = vlog2.pop %v554
          %v558 = vmul.f32 %v557, 0.6931472
          %v559 = vadd.f32 %v556, %v542
          %v560 = vadd.f32 %v558, %v544
          %v561 = vld [vmem:[%s363] sm:$0xff]
          %v562 = vld [vmem:[%s363 + $0x8] sm:$0xff]
          %v563 = vlaneseq
          %v564 = vand.u32 %v563, 127
          %565 = vset.pattern.permute.xlu0 0
          %566 = vperm.xlu0 %565, %v561
          %v567 = vpop.permute.xlu0 %566
          %568 = vset.pattern.permute.xlu0 0
          %569 = vperm.xlu0 %568, %v562
          %v570 = vpop.permute.xlu0 %569
          %vm571 = vcmp.eq.s32.totalorder %v564, %v567
          %vm572 = vcmp.eq.s32.totalorder %v564, %v570
          %v573 = vsel %vm571, %v525, 0.0
          %v574 = vsel %vm572, %v528, 0.0
          %575 = vadd.xlane.f32.xlu0 %v573
          %v576 = vpop.xlane.xlu0 %575
          %577 = vadd.xlane.f32.xlu0 %v574
          %v578 = vpop.xlane.xlu0 %577
          %vm579 = vcmp.ge.s32.totalorder %v561, 0
          %vm580 = vcmp.ge.s32.totalorder %v562, 0
          %vm581 = vcmp.lt.s32.totalorder %v561, 8
          %vm582 = vcmp.lt.s32.totalorder %v562, 8
          %vm583 = vmand %vm579, %vm581
          %vm584 = vmand %vm580, %vm582
          %v585 = vsub.f32 %v559, %v576
          %v586 = vsub.f32 %v560, %v578
          %v587 = vsel %vm583, %v585, 0.0
          %v588 = vsel %vm584, %v586, 0.0
          %vm589 = vcmask 7168
          %v590 = vsel %vm589, %v587, 0.0
          %v591 = vsel %vm589, %v588, 0.0
          %v592 = vadd.f32 %v590, %v591
          %593 = vadd.xlane.f32.xlu0 %v592
          %v594 = vpop.xlane.xlu0 %593
          %v595 = vrot.slane %v594, 4
          %v596 = vadd.f32 %v594, %v595
          %v597 = vrot.slane %v596, 2
          %v598 = vadd.f32 %v596, %v597
          %v599 = vrot.slane %v598, 1
          %v600 = vadd.f32 %v598, %v599
          %s601 = vtos %v600
          %v602 = vsel %vm583, 1, 0
          %v603 = vsel %vm584, 1, 0
          %v604 = vcvt.s32.f32 %v602
          %v605 = vcvt.s32.f32 %v603
          %v606 = vsel %vm589, %v604, 0.0
          %v607 = vsel %vm589, %v605, 0.0
          %v608 = vadd.f32 %v606, %v607
          %609 = vadd.xlane.f32.xlu0 %v608
          %v610 = vpop.xlane.xlu0 %609
          %v611 = vrot.slane %v610, 4
          %v612 = vadd.f32 %v610, %v611
          %v613 = vrot.slane %v612, 2
          %v614 = vadd.f32 %v612, %v613
          %v615 = vrot.slane %v614, 1
          %v616 = vadd.f32 %v614, %v615
          %s617 = vtos %v616
          %v618 = vlaneseq
          %v619 = vshrl.u32 %v618, 7
          %vm620 = vcmp.eq.s32.totalorder %v619, 0
          %vm621 = vcmp.eq.s32.totalorder %v564, 0
          %vm622 = vmand %vm620, %vm621
          %vm623 = vcmp.eq.s32.totalorder %v564, 1
          %vm624 = vmand %vm620, %vm623
          %v625 = vstv %s617
          %v626 = vsel %vm624, %v625, 0.0
          %v627 = vstv %s601
          %v628 = vsel %vm622, %v627, %v626
          %629 = vst [vmem:[%s349] sm:$0xff] %v628
        $region64: #{tpu_custom_call.1} parent=43 // pred_fallthru
          _
        %s630 = sand.u32 %s185, 1
        %s631 = scalar_lea.sflag [#allocation5], %s630
        %s632 = sand.u32 %s185, 1
        %s633 = smul.addr %s632, 8
        %s634 = scalar_lea.vmem [#allocation8], %s633
        %s635 = sand.u32 %s211, 1
        %s636 = scalar_lea.sflag [#allocation10], %s635
        %s637 = sand.u32 %s211, 1
        %s638 = smul.addr %s637, 8
        %s639 = scalar_lea.vmem [#allocation9], %s638
        // Predicated region
        $region65: #{tpu_custom_call.1} parent=43 // pred_check
          %p640 = pneg %p195
        $region66: #{tpu_custom_call.1} parent=43 // pred_check_branch
          %642 = sbr.rel (%p640) target = $region68
        $region67: #{tpu_custom_call.1} parent=43 // pred_region
          %s643 = smul.u32 2, %s31
          %s645 = ssub.s32 128, 128
          %646 = vsyncadd %s631, %s645
          %s647 = smul.addr %s643, 64
          %s648 = scalar_lea.hbm %s6, %s647
          %s649 = sshll.u32 %s634, 4
          %s650 = int_to_ptr.vmem [resolvable:$true] %s649
          %655 = dma.vmem_to_hbm [thread:$0]  %s650, 128, %s648, %s631, 64, 64, 4
        $region68: #{tpu_custom_call.1} parent=43 // pred_fallthru
          _
        // Predicated region
        $region69: #{tpu_custom_call.1} parent=43 // pred_check
          %p656 = pneg %p221
        $region70: #{tpu_custom_call.1} parent=43 // pred_check_branch
          %658 = sbr.rel (%p656) target = $region72
        $region71: #{tpu_custom_call.1} parent=43 // pred_region
          %s660 = ssub.s32 128, 128
          %661 = vsyncadd %s636, %s660
          %s662 = smul.addr %s31, 128
          %s663 = scalar_lea.hbm %s7, %s662
          %s665 = sshll.u32 %s639, 4
          %s666 = int_to_ptr.vmem [resolvable:$true] %s665
          %668 = dma.vmem_to_hbm [thread:$0]  %s666, 128, %s663, %s636
        $region72: #{tpu_custom_call.1} parent=43 // pred_fallthru
          _
      $region44: #{tpu_custom_call.1} parent=5 // pred_fallthru
        _
      %p669 = scmp.le.s32.totalorder 2, %s22
      // Predicated region
      $region73: #{tpu_custom_call.1} parent=5 // pred_check
        %p670 = pneg %p669
      $region74: #{tpu_custom_call.1} parent=5 // pred_check_branch
        %672 = sbr.rel (%p670) target = $region76
      $region75: #{tpu_custom_call.1} parent=5 // pred_region
        %s673 = ssub.s32 %s22, 2
        // Predicated region
        $region77: #{tpu_custom_call.1} parent=75 // pred_check
          %p674 = pneg %p201
        $region78: #{tpu_custom_call.1} parent=75 // pred_check_branch
          %676 = sbr.rel (%p674) target = $region80
        $region79: #{tpu_custom_call.1} parent=75 // pred_region
          %s677 = sand.u32 %s186, 1
          %s678 = scalar_lea.sflag [#allocation5], %s677
          %s679 = sand.u32 %s186, 1
          %s680 = smul.addr %s679, 8
          %s681 = scalar_lea.vmem [#allocation8], %s680
          %682 = dma.done %s678, 128
        $region80: #{tpu_custom_call.1} parent=75 // pred_fallthru
          _
        // Predicated region
        $region81: #{tpu_custom_call.1} parent=75 // pred_check
          %p683 = pneg %p227
        $region82: #{tpu_custom_call.1} parent=75 // pred_check_branch
          %685 = sbr.rel (%p683) target = $region84
        $region83: #{tpu_custom_call.1} parent=75 // pred_region
          %s686 = sand.u32 %s212, 1
          %s687 = scalar_lea.sflag [#allocation10], %s686
          %s688 = sand.u32 %s212, 1
          %s689 = smul.addr %s688, 8
          %s690 = scalar_lea.vmem [#allocation9], %s689
          %691 = dma.done %s687, 128
        $region84: #{tpu_custom_call.1} parent=75 // pred_fallthru
          _
      $region76: #{tpu_custom_call.1} parent=5 // pred_fallthru
        _
    $region6: #{tpu_custom_call.1} parent=1 // loop_footer
      %s26 = sadd.s32 1, %s22
    $region7: #{tpu_custom_call.1} parent=1 // loop_footer_branch
      %21 = sbr.rel target = $region3
    $region8: #{tpu_custom_call.1} parent=1 // loop_exit
      _
    %692 = vsyncpa [#allocation4], 1
    %s693 = scalar_lea.sflag [#allocation4], 1
    %694 = vsyncpa %s693, 1
    %695 = vsyncpa [#allocation7], 1
    %696 = vsyncpa [#allocation5], 1
    %s697 = scalar_lea.sflag [#allocation5], 1
    %698 = vsyncpa %s697, 1
    %699 = vsyncpa [#allocation10], 1
    %s700 = scalar_lea.sflag [#allocation10], 1
    %701 = vsyncpa %s700, 1

// kernel: tpu_custom_call.1
$region0: #{tpu_custom_call.1}
  #allocation0 [shape = 'u32[]', space=smem, size = 0x4, offset = 0x4, fixed_abs, tag = 'smem constant byte address 0x4 - core index']
  #allocation1 [shape = 'u32[144,128]{1,0:T(1,128)}', space=vmem, size = 0x12000, scoped, tag = 'internal scratch']
  #allocation2 [shape = 'f32[16,32]{1,0:T(8,128)}', space=vmem, size = 0x2000, scoped, tag = 'scratch operand']
  %s0 = inlined_call_operand.vmem [shape: f32[32,32], index: 0, kind: input, shape index: {}]
  %s1 = inlined_call_operand.hbm [shape: bf16[32,32], index: 1, kind: input, shape index: {}]
  %s2 = inlined_call_operand.vmem [shape: f32[1,32], index: 2, kind: input, shape index: {}]
  %s3 = inlined_call_operand.hbm [shape: bf16[32,128], index: 3, kind: input, shape index: {}]
  %s4 = inlined_call_operand.vmem [shape: f32[1,128], index: 4, kind: input, shape index: {}]
  %s5 = inlined_call_operand.vmem [shape: s32[32,1], index: 5, kind: input, shape index: {}]
  %s6 = inlined_call_operand.hbm [shape: bf16[32,128], index: 6, kind: output, shape index: {0}]
  %s7 = inlined_call_operand.hbm [shape: f32[2,8,128], index: 7, kind: output, shape index: {1}]
  %8 = xla_tuple %s6, %s7
  %s9 = sld [smem:[#allocation0]]
  $region85: #{tpu_custom_call.1} parent=0
    _
  %s11 = ssub.s32 1, %s9
  %s12 = scalar_select 0, %s11, %s9
  $region1: #{tpu_custom_call.1} parent=0
    #allocation3 [shape = 'u8[8192]{0}', space=vmem, size = 0x2000, scoped, tag = 'input window, operand 1, single buffered']
    #allocation4 [shape = 's32[2]{0}', space=sflag, size = 0x8, scoped, tag = 'scoped memory for tpu_custom_call.1']
    #allocation5 [shape = 's32[2]{0}', space=sflag, size = 0x8, scoped, tag = 'scoped memory for tpu_custom_call.1']
    #allocation6 [shape = 'u8[8192]{0}', space=vmem, size = 0x2000, scoped, tag = 'input window, operand 3, single buffered']
    #allocation7 [shape = 's32[1]{0}', space=sflag, size = 0x4, scoped, tag = 'scoped memory for tpu_custom_call.1']
    #allocation8 [shape = 'u8[8192]{0}', space=vmem, size = 0x2000, scoped, tag = 'output window, operand 0']
    #allocation9 [shape = 'u8[8192]{0}', space=vmem, size = 0x2000, scoped, tag = 'output window, operand 1']
    #allocation10 [shape = 's32[2]{0}', space=sflag, size = 0x8, scoped, tag = 'scoped memory for tpu_custom_call.1']
    %13 = vsyncpa [#allocation4], 0
    %14 = vsyncpa [#allocation7], 0
    %15 = vsyncpa [#allocation5], 0
    %s16 = scalar_lea.sflag [#allocation5], 1
    %17 = vsyncpa %s16, 0
    %18 = vsyncpa [#allocation10], 0
    %s19 = scalar_lea.sflag [#allocation10], 1
    %20 = vsyncpa %s19, 0
    loop: start=0, step=1, limit=4
    $region2: #{tpu_custom_call.1} parent=1 // loop_pre_header
      _
    $region3: #{tpu_custom_call.1} parent=1 // loop_header
      %s22 = sphi 0, %s26
      %p23 = scmp.ge.s32.totalorder %s22, 4
      %s29 = sphi 0, %s41
      %s30 = sphi 0, %s37
      %s31 = sphi 0, %s29
      %s32 = sphi 0, %s30
      %s33 = sphi 0, %s31
      %s34 = sphi 0, %s32
      %s46 = sphi 0, %s48
      %s49 = sphi 0, %s46
      %s50 = sphi 0, %s49
      %s66 = sphi 0, %s50
      %s70 = sphi 0, %s70
      %s72 = sphi 0, %s70
      %s73 = sphi 0, %s72
      %s87 = sphi 0, %s73
      %s91 = sphi 0, %s91
      %s93 = sphi 0, %s91
      %s94 = sphi 0, %s93
      %s108 = sphi 0, %s94
      %s112 = sphi 0, %s112
      %s114 = sphi 0, %s112
      %s115 = sphi 0, %s114
      %s129 = sphi 0, %s115
      %s133 = sphi 0, %s133
      %s135 = sphi 0, %s133
      %s136 = sphi 0, %s135
      %s150 = sphi 0, %s136
      %s156 = sphi 0, %s158
      %s159 = sphi 0, %s156
      %s160 = sphi 0, %s159
      %s176 = sphi 0, %s160
      %s182 = sphi 0, %s184
      %s185 = sphi 0, %s182
      %s186 = sphi 0, %s185
      %s202 = sphi 0, %s186
      %s208 = sphi 0, %s210
      %s211 = sphi 0, %s208
      %s212 = sphi 0, %s211
      %s228 = sphi 0, %s212
    $region4: #{tpu_custom_call.1} parent=1 // loop_header_branch
      %25 = sbr.rel (%p23) target = $region8
    $region5: #{tpu_custom_call.1} parent=1 // loop_body
      %s27 = ssub.s32 %s22, 1
      %s28 = ssub.s32 %s22, 2
      %s35 = sadd.s32 1, %s30
      %p36 = scmp.ge.s32.totalorder %s35, 1
      %s37 = scalar_select %p36, 0, %s35
      %s38 = sadd.s32 1, %s29
      %s39 = scalar_select %p36, %s38, %s29
      %p40 = scmp.ge.s32.totalorder %s39, 2
      %s41 = scalar_select %p40, 0, %s39
      %s42 = ssub.s32 %s29, %s41
      %s43 = ssub.s32 %s30, %s37
      %s44 = sor.u32 %s42, %s43
      %p45 = scmp.eq.s32.totalorder %s44, 0
      %s47 = sadd.s32 %s46, 1
      %s48 = scalar_select %p45, %s46, %s47
      %p51 = pneg %p45
      %p52 = scmp.eq.s32.totalorder %s22, 1
      %p53 = por %p51, %p52
      %p54 = scmp.ne.s32.totalorder %s46, %s49
      %p55 = scmp.eq.s32.totalorder %s22, 0
      %p56 = por %p54, %p55
      %p57 = scmp.ne.s32.totalorder %s46, %s49
      %p58 = scmp.eq.s32.totalorder %s27, 1
      %p59 = por %p57, %p58
      %p60 = scmp.ne.s32.totalorder %s49, %s50
      %p61 = scmp.eq.s32.totalorder %s27, 0
      %p62 = por %p60, %p61
      %p63 = scmp.ne.s32.totalorder %s49, %s50
      %p64 = scmp.eq.s32.totalorder %s28, 1
      %p65 = por %p63, %p64
      %p67 = scmp.ne.s32.totalorder %s50, %s66
      %p68 = scmp.eq.s32.totalorder %s28, 0
      %p69 = por %p67, %p68
      %s71 = sadd.s32 %s70, 1
      %p74 = scmp.eq.s32.totalorder %s22, 1
      %p75 = scmp.ne.s32.totalorder %s70, %s72
      %p76 = scmp.eq.s32.totalorder %s22, 0
      %p77 = por %p75, %p76
      %p78 = scmp.ne.s32.totalorder %s70, %s72
      %p79 = scmp.eq.s32.totalorder %s27, 1
      %p80 = por %p78, %p79
      %p81 = scmp.ne.s32.totalorder %s72, %s73
      %p82 = scmp.eq.s32.totalorder %s27, 0
      %p83 = por %p81, %p82
      %p84 = scmp.ne.s32.totalorder %s72, %s73
      %p85 = scmp.eq.s32.totalorder %s28, 1
      %p86 = por %p84, %p85
      %p88 = scmp.ne.s32.totalorder %s73, %s87
      %p89 = scmp.eq.s32.totalorder %s28, 0
      %p90 = por %p88, %p89
      %s92 = sadd.s32 %s91, 1
      %p95 = scmp.eq.s32.totalorder %s22, 1
      %p96 = scmp.ne.s32.totalorder %s91, %s93
      %p97 = scmp.eq.s32.totalorder %s22, 0
      %p98 = por %p96, %p97
      %p99 = scmp.ne.s32.totalorder %s91, %s93
      %p100 = scmp.eq.s32.totalorder %s27, 1
      %p101 = por %p99, %p100
      %p102 = scmp.ne.s32.totalorder %s93, %s94
      %p103 = scmp.eq.s32.totalorder %s27, 0
      %p104 = por %p102, %p103
      %p105 = scmp.ne.s32.totalorder %s93, %s94
      %p106 = scmp.eq.s32.totalorder %s28, 1
      %p107 = por %p105, %p106
      %p109 = scmp.ne.s32.totalorder %s94, %s108
      %p110 = scmp.eq.s32.totalorder %s28, 0
      %p111 = por %p109, %p110
      %s113 = sadd.s32 %s112, 1
      %p116 = scmp.eq.s32.totalorder %s22, 1
      %p117 = scmp.ne.s32.totalorder %s112, %s114
      %p118 = scmp.eq.s32.totalorder %s22, 0
      %p119 = por %p117, %p118
      %p120 = scmp.ne.s32.totalorder %s112, %s114
      %p121 = scmp.eq.s32.totalorder %s27, 1
      %p122 = por %p120, %p121
      %p123 = scmp.ne.s32.totalorder %s114, %s115
      %p124 = scmp.eq.s32.totalorder %s27, 0
      %p125 = por %p123, %p124
      %p126 = scmp.ne.s32.totalorder %s114, %s115
      %p127 = scmp.eq.s32.totalorder %s28, 1
      %p128 = por %p126, %p127
      %p130 = scmp.ne.s32.totalorder %s115, %s129
      %p131 = scmp.eq.s32.totalorder %s28, 0
      %p132 = por %p130, %p131
      %s134 = sadd.s32 %s133, 1
      %p137 = scmp.eq.s32.totalorder %s22, 1
      %p138 = scmp.ne.s32.totalorder %s133, %s135
      %p139 = scmp.eq.s32.totalorder %s22, 0
      %p140 = por %p138, %p139
      %p141 = scmp.ne.s32.totalorder %s133, %s135
      %p142 = scmp.eq.s32.totalorder %s27, 1
      %p143 = por %p141, %p142
      %p144 = scmp.ne.s32.totalorder %s135, %s136
      %p145 = scmp.eq.s32.totalorder %s27, 0
      %p146 = por %p144, %p145
      %p147 = scmp.ne.s32.totalorder %s135, %s136
      %p148 = scmp.eq.s32.totalorder %s28, 1
      %p149 = por %p147, %p148
      %p151 = scmp.ne.s32.totalorder %s136, %s150
      %p152 = scmp.eq.s32.totalorder %s28, 0
      %p153 = por %p151, %p152
      %s154 = ssub.s32 %s29, %s41
      %p155 = scmp.eq.s32.totalorder %s154, 0
      %s157 = sadd.s32 %s156, 1
      %s158 = scalar_select %p155, %s156, %s157
      %p161 = pneg %p155
      %p162 = scmp.eq.s32.totalorder %s22, 1
      %p163 = por %p161, %p162
      %p164 = scmp.ne.s32.totalorder %s156, %s159
      %p165 = scmp.eq.s32.totalorder %s22, 0
      %p166 = por %p164, %p165
      %p167 = scmp.ne.s32.totalorder %s156, %s159
      %p168 = scmp.eq.s32.totalorder %s27, 1
      %p169 = por %p167, %p168
      %p170 = scmp.ne.s32.totalorder %s159, %s160
      %p171 = scmp.eq.s32.totalorder %s27, 0
      %p172 = por %p170, %p171
      %p173 = scmp.ne.s32.totalorder %s159, %s160
      %p174 = scmp.eq.s32.totalorder %s28, 1
      %p175 = por %p173, %p174
      %p177 = scmp.ne.s32.totalorder %s160, %s176
      %p178 = scmp.eq.s32.totalorder %s28, 0
      %p179 = por %p177, %p178
      %s180 = ssub.s32 %s29, %s41
      %p181 = scmp.eq.s32.totalorder %s180, 0
      %s183 = sadd.s32 %s182, 1
      %s184 = scalar_select %p181, %s182, %s183
      %p187 = pneg %p181
      %p188 = scmp.eq.s32.totalorder %s22, 1
      %p189 = por %p187, %p188
      %p190 = scmp.ne.s32.totalorder %s182, %s185
      %p191 = scmp.eq.s32.totalorder %s22, 0
      %p192 = por %p190, %p191
      %p193 = scmp.ne.s32.totalorder %s182, %s185
      %p194 = scmp.eq.s32.totalorder %s27, 1
      %p195 = por %p193, %p194
      %p196 = scmp.ne.s32.totalorder %s185, %s186
      %p197 = scmp.eq.s32.totalorder %s27, 0
      %p198 = por %p196, %p197
      %p199 = scmp.ne.s32.totalorder %s185, %s186
      %p200 = scmp.eq.s32.totalorder %s28, 1
      %p201 = por %p199, %p200
      %p203 = scmp.ne.s32.totalorder %s186, %s202
      %p204 = scmp.eq.s32.totalorder %s28, 0
      %p205 = por %p203, %p204
      %s206 = ssub.s32 %s29, %s41
      %p207 = scmp.eq.s32.totalorder %s206, 0
      %s209 = sadd.s32 %s208, 1
      %s210 = scalar_select %p207, %s208, %s209
      %p213 = pneg %p207
      %p214 = scmp.eq.s32.totalorder %s22, 1
      %p215 = por %p213, %p214
      %p216 = scmp.ne.s32.totalorder %s208, %s211
      %p217 = scmp.eq.s32.totalorder %s22, 0
      %p218 = por %p216, %p217
      %p219 = scmp.ne.s32.totalorder %s208, %s211
      %p220 = scmp.eq.s32.totalorder %s27, 1
      %p221 = por %p219, %p220
      %p222 = scmp.ne.s32.totalorder %s211, %s212
      %p223 = scmp.eq.s32.totalorder %s27, 0
      %p224 = por %p222, %p223
      %p225 = scmp.ne.s32.totalorder %s211, %s212
      %p226 = scmp.eq.s32.totalorder %s28, 1
      %p227 = por %p225, %p226
      %p229 = scmp.ne.s32.totalorder %s212, %s228
      %p230 = scmp.eq.s32.totalorder %s28, 0
      %p231 = por %p229, %p230
      %p232 = scmp.le.s32.totalorder 1, %s22
      %p233 = scmp.lt.s32.totalorder %s22, 3
      %p234 = pnand %p232, %p233
      %p235 = pneg %p234
      // Predicated region
      $region9: #{tpu_custom_call.1} parent=5 // pred_check
        _
      $region10: #{tpu_custom_call.1} parent=5 // pred_check_branch
        %237 = sbr.rel (%p234) target = $region12
      $region11: #{tpu_custom_call.1} parent=5 // pred_region
        %s238 = ssub.s32 %s22, 1
        // Predicated region
        $region13: #{tpu_custom_call.1} parent=11 // pred_check
          %p239 = pneg %p83
        $region14: #{tpu_custom_call.1} parent=11 // pred_check_branch
          %241 = sbr.rel (%p239) target = $region16
        $region15: #{tpu_custom_call.1} parent=11 // pred_region
          %s243 = ssub.s32 256, 256
          %244 = vsyncadd [#allocation4], %s243
          %s245 = sshll.u32 [#allocation3], 4
          %s246 = int_to_ptr.vmem [resolvable:$true] %s245
          %251 = dma.hbm_to_vmem [thread:$0]  %s1, 256, %s246, [#allocation4], 64, 64, 4
        $region16: #{tpu_custom_call.1} parent=11 // pred_fallthru
          _
        // Predicated region
        $region17: #{tpu_custom_call.1} parent=11 // pred_check
          %p252 = pneg %p104
        $region18: #{tpu_custom_call.1} parent=11 // pred_check_branch
          %254 = sbr.rel (%p252) target = $region20
        $region19: #{tpu_custom_call.1} parent=11 // pred_region
          _
        $region20: #{tpu_custom_call.1} parent=11 // pred_fallthru
          _
        // Predicated region
        $region21: #{tpu_custom_call.1} parent=11 // pred_check
          %p255 = pneg %p125
        $region22: #{tpu_custom_call.1} parent=11 // pred_check_branch
          %257 = sbr.rel (%p255) target = $region24
        $region23: #{tpu_custom_call.1} parent=11 // pred_region
          %s259 = ssub.s32 256, 256
          %260 = vsyncadd [#allocation7], %s259
          %s261 = sshll.u32 [#allocation6], 4
          %s262 = int_to_ptr.vmem [resolvable:$true] %s261
          %267 = dma.hbm_to_vmem [thread:$0]  %s3, 256, %s262, [#allocation7], 64, 64, 4
        $region24: #{tpu_custom_call.1} parent=11 // pred_fallthru
          _
        // Predicated region
        $region25: #{tpu_custom_call.1} parent=11 // pred_check
          %p268 = pneg %p146
        $region26: #{tpu_custom_call.1} parent=11 // pred_check_branch
          %270 = sbr.rel (%p268) target = $region28
        $region27: #{tpu_custom_call.1} parent=11 // pred_region
          _
        $region28: #{tpu_custom_call.1} parent=11 // pred_fallthru
          _
      $region12: #{tpu_custom_call.1} parent=5 // pred_fallthru
        _
      %p271 = scmp.lt.s32.totalorder %s22, 2
      // Predicated region
      $region29: #{tpu_custom_call.1} parent=5 // pred_check
        %p272 = pneg %p271
      $region30: #{tpu_custom_call.1} parent=5 // pred_check_branch
        %274 = sbr.rel (%p272) target = $region32
      $region31: #{tpu_custom_call.1} parent=5 // pred_region
        // Predicated region
        $region33: #{tpu_custom_call.1} parent=31 // pred_check
          %p275 = pneg %p56
        $region34: #{tpu_custom_call.1} parent=31 // pred_check_branch
          %277 = sbr.rel (%p275) target = $region36
        $region35: #{tpu_custom_call.1} parent=31 // pred_region
          %s278 = smul.u32 2, %s29
          %p279 = scmp.lt.s32.totalorder %s278, 3
          %s280 = scalar_select %p279, %s278, 3
          %p281 = scmp.lt.s32.totalorder %s30, 0
          %s282 = scalar_select %p281, %s30, 0
          %s283 = sadd.s32 %s282, %s280
          %s284 = smul.addr %s283, 8
          %s285 = scalar_lea.vmem %s0, %s284
          %s286 = smul.u32 2, %s29
        $region36: #{tpu_custom_call.1} parent=31 // pred_fallthru
          _
        // Predicated region
        $region37: #{tpu_custom_call.1} parent=31 // pred_check
          %p287 = pneg %p166
        $region38: #{tpu_custom_call.1} parent=31 // pred_check_branch
          %289 = sbr.rel (%p287) target = $region40
        $region39: #{tpu_custom_call.1} parent=31 // pred_region
          %s290 = smul.u32 2, %s29
          %p291 = scmp.lt.s32.totalorder %s290, 3
          %s292 = scalar_select %p291, %s290, 3
          %s293 = smul.addr %s292, 8
          %s294 = scalar_lea.vmem %s5, %s293
          %s295 = smul.u32 2, %s29
        $region40: #{tpu_custom_call.1} parent=31 // pred_fallthru
          _
      $region32: #{tpu_custom_call.1} parent=5 // pred_fallthru
        _
      %p296 = scmp.le.s32.totalorder 1, %s22
      %p297 = scmp.lt.s32.totalorder %s22, 3
      %p298 = pnand %p296, %p297
      %p299 = pneg %p298
      // Predicated region
      $region41: #{tpu_custom_call.1} parent=5 // pred_check
        _
      $region42: #{tpu_custom_call.1} parent=5 // pred_check_branch
        %301 = sbr.rel (%p298) target = $region44
      $region43: #{tpu_custom_call.1} parent=5 // pred_region
        %s302 = ssub.s32 %s22, 1
        // Predicated region
        $region45: #{tpu_custom_call.1} parent=43 // pred_check
          %p303 = pneg %p83
        $region46: #{tpu_custom_call.1} parent=43 // pred_check_branch
          %305 = sbr.rel (%p303) target = $region48
        $region47: #{tpu_custom_call.1} parent=43 // pred_region
          %306 = dma.done [#allocation4], 256
        $region48: #{tpu_custom_call.1} parent=43 // pred_fallthru
          _
        // Predicated region
        $region49: #{tpu_custom_call.1} parent=43 // pred_check
          %p307 = pneg %p125
        $region50: #{tpu_custom_call.1} parent=43 // pred_check_branch
          %309 = sbr.rel (%p307) target = $region52
        $region51: #{tpu_custom_call.1} parent=43 // pred_region
          %310 = dma.done [#allocation7], 256
        $region52: #{tpu_custom_call.1} parent=43 // pred_fallthru
          _
        %s311 = smul.u32 2, %s31
        %p312 = scmp.lt.s32.totalorder %s311, 3
        %s313 = scalar_select %p312, %s311, 3
        %p314 = scmp.lt.s32.totalorder %s32, 0
        %s315 = scalar_select %p314, %s32, 0
        %s316 = sadd.s32 %s315, %s313
        %s317 = smul.addr %s316, 8
        %s318 = scalar_lea.vmem %s0, %s317
        %p319 = pneg %p62
        %p320 = pneg %p59
        %p321 = pneg %p83
        %p322 = pneg %p80
        %p323 = pneg %p104
        %p324 = pneg %p101
        %p325 = pneg %p125
        %p326 = pneg %p122
        %p327 = pneg %p146
        %p328 = pneg %p143
        %s329 = smul.u32 2, %s31
        %p330 = scmp.lt.s32.totalorder %s329, 3
        %s331 = scalar_select %p330, %s329, 3
        %s332 = smul.addr %s331, 8
        %s333 = scalar_lea.vmem %s5, %s332
        %p334 = pneg %p172
        %p335 = pneg %p169
        %p336 = pneg %p198
        %p337 = pneg %p195
        %s338 = sand.u32 %s185, 1
        %s339 = scalar_lea.sflag [#allocation5], %s338
        %s340 = sand.u32 %s185, 1
        %s341 = smul.addr %s340, 8
        %s342 = scalar_lea.vmem [#allocation8], %s341
        %p343 = pneg %p224
        %p344 = pneg %p221
        %s345 = sand.u32 %s211, 1
        %s346 = scalar_lea.sflag [#allocation10], %s345
        %s347 = sand.u32 %s211, 1
        %s348 = smul.addr %s347, 8
        %s349 = scalar_lea.vmem [#allocation9], %s348
        %s350 = smul.u32 2, %s31
        %p351 = scmp.lt.s32.totalorder %s350, 3
        %s352 = scalar_select %p351, %s350, 3
        %p353 = scmp.lt.s32.totalorder %s32, 0
        %s354 = scalar_select %p353, %s32, 0
        %s355 = sadd.s32 %s354, %s352
        %s356 = smul.addr %s355, 8
        %s357 = scalar_lea.vmem %s0, %s356
        %s358 = smul.u32 2, %s31
        %s359 = smul.u32 2, %s31
        %p360 = scmp.lt.s32.totalorder %s359, 3
        %s361 = scalar_select %p360, %s359, 3
        %s362 = smul.addr %s361, 8
        %s363 = scalar_lea.vmem %s5, %s362
        %s364 = smul.u32 2, %s31
        %s365 = smul.u32 2, %s31
        %v367 = vld [vmem:[%s357] sm:$0xff]
        %v368 = vld [vmem:[%s357 + $0x8] sm:$0xff]
        %v369 = vpack.c.bf16 %v368, %v367
        %v370 = vld [vmem:[#allocation3] sm:$0xf]
        %v371 = vld [vmem:[#allocation3 + $0x4] sm:$0xf]
        %v372 = vld [vmem:[#allocation3 + $0x8] sm:$0xf]
        %v373 = vld [vmem:[#allocation3 + $0xc] sm:$0xf]
        %v378 = vunpack.c.l.b16 %v370
        %v379 = vunpack.c.l.b16 %v371
        %v380 = vunpack.c.l.b16 %v372
        %v381 = vunpack.c.l.b16 %v373
        %v382 = vpack.c.b16 %v379, %v378
        %v383 = vpack.c.b16 %v381, %v380
        %vm386 = vcmask 261120
        %v388 = vsel %vm386, %v369, 0
        %390 = vmatprep.subr.bf16.mxu0 0
        %391 = vmatpush1.bf16.msra.mxu0 0
        %392 = vmatprep.subr.bf16.mxu0 0
        %393 = vmatpush1.bf16.msra.mxu0 0
        %394 = vmatprep.subr.bf16.mxu0 0
        %395 = vmatpush1.bf16.msra.mxu0 0
        %396 = vmatprep.subr.bf16.mxu0 0
        %397 = vmatpush1.bf16.msra.mxu0 0
        %398 = vmatprep.subr.bf16.mxu0 0
        %399 = vmatpush1.bf16.msra.mxu0 0
        %400 = vmatprep.subr.bf16.mxu0 0
        %401 = vmatpush1.bf16.msra.mxu0 0
        %402 = vmatprep.subr.bf16.mxu0 0
        %403 = vmatpush1.bf16.msra.mxu0 %v383
        %404 = vmatprep.subr.bf16.mxu0 0
        %405 = vmatpush1.bf16.msra.mxu0 %v382
        %406 = vmatprep.subr.bf16.mxu0 0
        %407 = vmatpush2.bf16.msra.mxu0 0
        %408 = vmatprep.subr.bf16.mxu0 0
        %409 = vmatpush2.bf16.msra.mxu0 0
        %410 = vmatprep.subr.bf16.mxu0 0
        %411 = vmatpush2.bf16.msra.mxu0 0
        %412 = vmatprep.subr.bf16.mxu0 0
        %413 = vmatpush2.bf16.msra.mxu0 0
        %414 = vmatprep.subr.bf16.mxu0 0
        %415 = vmatpush2.bf16.msra.mxu0 0
        %416 = vmatprep.subr.bf16.mxu0 0
        %417 = vmatpush2.bf16.msra.mxu0 0
        %418 = vmatprep.subr.bf16.mxu0 0
        %419 = vmatpush2.bf16.msra.mxu0 0
        %420 = vmatprep.subr.bf16.mxu0 0
        %421 = vmatpush2.bf16.msra.mxu0 0
        %422 = vmatprep.mubr.bf16.mxu0 0
        %423 = vmatmul.mubr.bf16.gmra.mxu0 %v388
        %v424 = vpop.f32.mrf.mxu0
        %v425 = vadd.f32 0.0, %v424
        %v426 = vpop.f32.mrf.mxu0
        %v427 = vpop.f32.mrf.mxu0
        %v428 = vadd.f32 0.0, %v427
        %v429 = vpop.f32.mrf.mxu0
        %430 = vdwg.mxu0
        %p431 = scmp.eq.s32.totalorder %s32, 0
        // Predicated region
        $region53: #{tpu_custom_call.1} parent=43 // pred_check
          %p432 = pneg %p431
        $region54: #{tpu_custom_call.1} parent=43 // pred_check_branch
          %434 = sbr.rel (%p432) target = $region56
        $region55: #{tpu_custom_call.1} parent=43 // pred_region
          %435 = vst.msk [vmem:[#allocation2] sm:$0xff] %vm386, %v425
          %436 = vst.msk [vmem:[#allocation2 + $0x8] sm:$0xff] %vm386, %v428
        $region56: #{tpu_custom_call.1} parent=43 // pred_fallthru
          _
        %p437 = scmp.gt.s32.totalorder %s32, 0
        // Predicated region
        $region57: #{tpu_custom_call.1} parent=43 // pred_check
          %p438 = pneg %p437
        $region58: #{tpu_custom_call.1} parent=43 // pred_check_branch
          %440 = sbr.rel (%p438) target = $region60
        $region59: #{tpu_custom_call.1} parent=43 // pred_region
          %v441 = vld [vmem:[#allocation2] sm:$0xff]
          %v442 = vld [vmem:[#allocation2 + $0x8] sm:$0xff]
          %v443 = vadd.f32 %v441, %v425
          %v444 = vadd.f32 %v442, %v428
          %445 = vst.msk [vmem:[#allocation2] sm:$0xff] %vm386, %v443
          %446 = vst.msk [vmem:[#allocation2 + $0x8] sm:$0xff] %vm386, %v444
        $region60: #{tpu_custom_call.1} parent=43 // pred_fallthru
          _
        // Predicated region
        $region61: #{tpu_custom_call.1} parent=43 // pred_check
          %p447 = pneg %p431
        $region62: #{tpu_custom_call.1} parent=43 // pred_check_branch
          %449 = sbr.rel (%p447) target = $region64
        $region63: #{tpu_custom_call.1} parent=43 // pred_region
          %v450 = vld [vmem:[#allocation2] sm:$0xff]
          %v451 = vld [vmem:[#allocation2 + $0x8] sm:$0xff]
          %v452 = vld [vmem:[%s2] sm:$0x1]
          %v454 = vlaneseq
          %v455 = vshrl.u32 %v454, 7
          %v456 = vsub.s32 0, %v455
          %v457 = vrot.slane %v452, %v456
          %v459 = vadd.f32 %v450, %v457
          %v460 = vadd.f32 %v451, %v457
          %v461 = vtanh.pop %v459
          %v462 = vtanh.pop %v460
          %v463 = vpack.c.bf16 %v462, %v461
          %v464 = vld [vmem:[#allocation6] sm:$0xf]
          %v465 = vld [vmem:[#allocation6 + $0x4] sm:$0xf]
          %v466 = vld [vmem:[#allocation6 + $0x8] sm:$0xf]
          %v467 = vld [vmem:[#allocation6 + $0xc] sm:$0xf]
          %v468 = vld [vmem:[%s4] sm:$0x1]
          %v470 = vlaneseq
          %v471 = vshrl.u32 %v470, 7
          %v472 = vsub.s32 0, %v471
          %v473 = vrot.slane %v468, %v472
          %v479 = vunpack.c.l.b16 %v464
          %v480 = vunpack.c.l.b16 %v465
          %v481 = vunpack.c.l.b16 %v466
          %v482 = vunpack.c.l.b16 %v467
          %v483 = vpack.c.b16 %v480, %v479
          %v484 = vpack.c.b16 %v482, %v481
          %v488 = vsel %vm386, %v463, 0
          %490 = vmatprep.subr.bf16.mxu0 0
          %491 = vmatpush1.bf16.msra.mxu0 0
          %492 = vmatprep.subr.bf16.mxu0 0
          %493 = vmatpush1.bf16.msra.mxu0 0
          %494 = vmatprep.subr.bf16.mxu0 0
          %495 = vmatpush1.bf16.msra.mxu0 0
          %496 = vmatprep.subr.bf16.mxu0 0
          %497 = vmatpush1.bf16.msra.mxu0 0
          %498 = vmatprep.subr.bf16.mxu0 0
          %499 = vmatpush1.bf16.msra.mxu0 0
          %500 = vmatprep.subr.bf16.mxu0 0
          %501 = vmatpush1.bf16.msra.mxu0 0
          %502 = vmatprep.subr.bf16.mxu0 0
          %503 = vmatpush1.bf16.msra.mxu0 %v484
          %504 = vmatprep.subr.bf16.mxu0 0
          %505 = vmatpush1.bf16.msra.mxu0 %v483
          %506 = vmatprep.subr.bf16.mxu0 0
          %507 = vmatpush2.bf16.msra.mxu0 0
          %508 = vmatprep.subr.bf16.mxu0 0
          %509 = vmatpush2.bf16.msra.mxu0 0
          %510 = vmatprep.subr.bf16.mxu0 0
          %511 = vmatpush2.bf16.msra.mxu0 0
          %512 = vmatprep.subr.bf16.mxu0 0
          %513 = vmatpush2.bf16.msra.mxu0 0
          %514 = vmatprep.subr.bf16.mxu0 0
          %515 = vmatpush2.bf16.msra.mxu0 0
          %516 = vmatprep.subr.bf16.mxu0 0
          %517 = vmatpush2.bf16.msra.mxu0 0
          %518 = vmatprep.subr.bf16.mxu0 0
          %519 = vmatpush2.bf16.msra.mxu0 0
          %520 = vmatprep.subr.bf16.mxu0 0
          %521 = vmatpush2.bf16.msra.mxu0 0
          %522 = vmatprep.mubr.bf16.mxu0 0
          %523 = vmatmul.mubr.bf16.gmra.mxu0 %v488
          %v524 = vpop.f32.mrf.mxu0
          %v525 = vadd.f32 %v473, %v524
          %v526 = vpop.f32.mrf.mxu0
          %v527 = vpop.f32.mrf.mxu0
          %v528 = vadd.f32 %v473, %v527
          %v529 = vpop.f32.mrf.mxu0
          %530 = vdwg.mxu0
          %v531 = vpack.c.bf16 %v528, %v525
          %v533 = vunpack.c.l.b16 %v531
          %v534 = vunpack.c.h.b16 %v531
          %v535 = vpack.c.b16 %v533, %v533
          %v536 = vpack.c.b16 %v534, %v534
          %539 = vst [vmem:[%s342] sm:$0xf] %v535
          %540 = vst [vmem:[%s342 + $0x4] sm:$0xf] %v536
          %541 = vmax.xlane.f32.xlu0 %v525
          %v542 = vpop.xlane.xlu0 %541
          %543 = vmax.xlane.f32.xlu0 %v528
          %v544 = vpop.xlane.xlu0 %543
          %v545 = vsub.f32 %v525, %v542
          %v546 = vsub.f32 %v528, %v544
          %v547 = vmul.f32 %v545, 1.442695
          %v548 = vpow.pop %v547
          %v549 = vmul.f32 %v546, 1.442695
          %v550 = vpow.pop %v549
          %551 = vadd.xlane.f32.xlu0 %v548
          %v552 = vpop.xlane.xlu0 %551
          %553 = vadd.xlane.f32.xlu0 %v550
          %v554 = vpop.xlane.xlu0 %553
          %v555 = vlog2.pop %v552
          %v556 = vmul.f32 %v555, 0.6931472
          %v557 = vlog2.pop %v554
          %v558 = vmul.f32 %v557, 0.6931472
          %v559 = vadd.f32 %v556, %v542
          %v560 = vadd.f32 %v558, %v544
          %v561 = vld [vmem:[%s363] sm:$0xff]
          %v562 = vld [vmem:[%s363 + $0x8] sm:$0xff]
          %v563 = vlaneseq
          %v564 = vand.u32 %v563, 127
          %565 = vset.pattern.permute.xlu0 0
          %566 = vperm.xlu0 %565, %v561
          %v567 = vpop.permute.xlu0 %566
          %568 = vset.pattern.permute.xlu0 0
          %569 = vperm.xlu0 %568, %v562
          %v570 = vpop.permute.xlu0 %569
          %vm571 = vcmp.eq.s32.totalorder %v564, %v567
          %vm572 = vcmp.eq.s32.totalorder %v564, %v570
          %v573 = vsel %vm571, %v525, 0.0
          %v574 = vsel %vm572, %v528, 0.0
          %575 = vadd.xlane.f32.xlu0 %v573
          %v576 = vpop.xlane.xlu0 %575
          %577 = vadd.xlane.f32.xlu0 %v574
          %v578 = vpop.xlane.xlu0 %577
          %vm579 = vcmp.ge.s32.totalorder %v561, 0
          %vm580 = vcmp.ge.s32.totalorder %v562, 0
          %vm581 = vcmp.lt.s32.totalorder %v561, 8
          %vm582 = vcmp.lt.s32.totalorder %v562, 8
          %vm583 = vmand %vm579, %vm581
          %vm584 = vmand %vm580, %vm582
          %v585 = vsub.f32 %v559, %v576
          %v586 = vsub.f32 %v560, %v578
          %v587 = vsel %vm583, %v585, 0.0
          %v588 = vsel %vm584, %v586, 0.0
          %vm589 = vcmask 7168
          %v590 = vsel %vm589, %v587, 0.0
          %v591 = vsel %vm589, %v588, 0.0
          %v592 = vadd.f32 %v590, %v591
          %593 = vadd.xlane.f32.xlu0 %v592
          %v594 = vpop.xlane.xlu0 %593
          %v595 = vrot.slane %v594, 4
          %v596 = vadd.f32 %v594, %v595
          %v597 = vrot.slane %v596, 2
          %v598 = vadd.f32 %v596, %v597
          %v599 = vrot.slane %v598, 1
          %v600 = vadd.f32 %v598, %v599
          %s601 = vtos %v600
          %v602 = vsel %vm583, 1, 0
          %v603 = vsel %vm584, 1, 0
          %v604 = vcvt.s32.f32 %v602
          %v605 = vcvt.s32.f32 %v603
          %v606 = vsel %vm589, %v604, 0.0
          %v607 = vsel %vm589, %v605, 0.0
          %v608 = vadd.f32 %v606, %v607
          %609 = vadd.xlane.f32.xlu0 %v608
          %v610 = vpop.xlane.xlu0 %609
          %v611 = vrot.slane %v610, 4
          %v612 = vadd.f32 %v610, %v611
          %v613 = vrot.slane %v612, 2
          %v614 = vadd.f32 %v612, %v613
          %v615 = vrot.slane %v614, 1
          %v616 = vadd.f32 %v614, %v615
          %s617 = vtos %v616
          %v618 = vlaneseq
          %v619 = vshrl.u32 %v618, 7
          %vm620 = vcmp.eq.s32.totalorder %v619, 0
          %vm621 = vcmp.eq.s32.totalorder %v564, 0
          %vm622 = vmand %vm620, %vm621
          %vm623 = vcmp.eq.s32.totalorder %v564, 1
          %vm624 = vmand %vm620, %vm623
          %v625 = vstv %s617
          %v626 = vsel %vm624, %v625, 0.0
          %v627 = vstv %s601
          %v628 = vsel %vm622, %v627, %v626
          %629 = vst [vmem:[%s349] sm:$0xff] %v628
        $region64: #{tpu_custom_call.1} parent=43 // pred_fallthru
          _
        %s630 = sand.u32 %s185, 1
        %s631 = scalar_lea.sflag [#allocation5], %s630
        %s632 = sand.u32 %s185, 1
        %s633 = smul.addr %s632, 8
        %s634 = scalar_lea.vmem [#allocation8], %s633
        %s635 = sand.u32 %s211, 1
        %s636 = scalar_lea.sflag [#allocation10], %s635
        %s637 = sand.u32 %s211, 1
        %s638 = smul.addr %s637, 8
        %s639 = scalar_lea.vmem [#allocation9], %s638
        // Predicated region
        $region65: #{tpu_custom_call.1} parent=43 // pred_check
          %p640 = pneg %p195
        $region66: #{tpu_custom_call.1} parent=43 // pred_check_branch
          %642 = sbr.rel (%p640) target = $region68
        $region67: #{tpu_custom_call.1} parent=43 // pred_region
          %s643 = smul.u32 2, %s31
          %s645 = ssub.s32 128, 128
          %646 = vsyncadd %s631, %s645
          %s647 = smul.addr %s643, 64
          %s648 = scalar_lea.hbm %s6, %s647
          %s649 = sshll.u32 %s634, 4
          %s650 = int_to_ptr.vmem [resolvable:$true] %s649
          %655 = dma.vmem_to_hbm [thread:$0]  %s650, 128, %s648, %s631, 64, 64, 4
        $region68: #{tpu_custom_call.1} parent=43 // pred_fallthru
          _
        // Predicated region
        $region69: #{tpu_custom_call.1} parent=43 // pred_check
          %p656 = pneg %p221
        $region70: #{tpu_custom_call.1} parent=43 // pred_check_branch
          %658 = sbr.rel (%p656) target = $region72
        $region71: #{tpu_custom_call.1} parent=43 // pred_region
          %s660 = ssub.s32 128, 128
          %661 = vsyncadd %s636, %s660
          %s662 = smul.addr %s31, 128
          %s663 = scalar_lea.hbm %s7, %s662
          %s665 = sshll.u32 %s639, 4
          %s666 = int_to_ptr.vmem [resolvable:$true] %s665
          %668 = dma.vmem_to_hbm [thread:$0]  %s666, 128, %s663, %s636
        $region72: #{tpu_custom_call.1} parent=43 // pred_fallthru
          _
      $region44: #{tpu_custom_call.1} parent=5 // pred_fallthru
        _
      %p669 = scmp.le.s32.totalorder 2, %s22
      // Predicated region
      $region73: #{tpu_custom_call.1} parent=5 // pred_check
        %p670 = pneg %p669
      $region74: #{tpu_custom_call.1} parent=5 // pred_check_branch
        %672 = sbr.rel (%p670) target = $region76
      $region75: #{tpu_custom_call.1} parent=5 // pred_region
        %s673 = ssub.s32 %s22, 2
        // Predicated region
        $region77: #{tpu_custom_call.1} parent=75 // pred_check
          %p674 = pneg %p201
        $region78: #{tpu_custom_call.1} parent=75 // pred_check_branch
          %676 = sbr.rel (%p674) target = $region80
        $region79: #{tpu_custom_call.1} parent=75 // pred_region
          %s677 = sand.u32 %s186, 1
          %s678 = scalar_lea.sflag [#allocation5], %s677
          %s679 = sand.u32 %s186, 1
          %s680 = smul.addr %s679, 8
          %s681 = scalar_lea.vmem [#allocation8], %s680
          %682 = dma.done %s678, 128
        $region80: #{tpu_custom_call.1} parent=75 // pred_fallthru
          _
        // Predicated region
        $region81: #{tpu_custom_call.1} parent=75 // pred_check
          %p683 = pneg %p227
        $region82: #{tpu_custom_call.1} parent=75 // pred_check_branch
          %685 = sbr.rel (%p683) target = $region84
        $region83: #{tpu_custom_call.1} parent=75 // pred_region
          %s686 = sand.u32 %s212, 1
          %s687 = scalar_lea.sflag [#allocation10], %s686
          %s688 = sand.u32 %s212, 1
          %s689 = smul.addr %s688, 8
          %s690 = scalar_lea.vmem [#allocation9], %s689
          %691 = dma.done %s687, 128
        $region84: #{tpu_custom_call.1} parent=75 // pred_fallthru
          _
      $region76: #{tpu_custom_call.1} parent=5 // pred_fallthru
        _
    $region6: #{tpu_custom_call.1} parent=1 // loop_footer
      %s26 = sadd.s32 1, %s22
    $region7: #{tpu_custom_call.1} parent=1 // loop_footer_branch
      %21 = sbr.rel target = $region3
    $region8: #{tpu_custom_call.1} parent=1 // loop_exit
      _
    %692 = vsyncpa [#allocation4], 1
    %s693 = scalar_lea.sflag [#allocation4], 1
    %694 = vsyncpa %s693, 1
    %695 = vsyncpa [#allocation7], 1
    %696 = vsyncpa [#allocation5], 1
    %s697 = scalar_lea.sflag [#allocation5], 1
    %698 = vsyncpa %s697, 1
    %699 = vsyncpa [#allocation10], 1
    %s700 = scalar_lea.sflag [#allocation10], 1
    %701 = vsyncpa %s700, 1

</llo_original>
